<compile_context>
chip_gen: v6e
topology: v6e:2x2x1
jax: 0.10.0
libtpu: 0.0.40
codegen_flags: <defaults>
</compile_context>

<pallas_src>
import functools

import jax
import jax.numpy as jnp
from jax.experimental import pallas as pl
from jax.experimental.pallas import tpu as pltpu


def top_attention_kernel(x_ref, w1_ref, b1_ref, w2_ref, wfc_ref, bfc_ref,
                         out_ref, sp_ref, ar_ref, *, seg, spatial):
    """Fused SpaAttention + group-mean + FC for one group of `seg` samples.

    x_ref:   (1, C, L)       one group, lane-dense layout, L = seg * spatial
    w1_ref:  (M, C)          conv1 1x1 weight
    b1_ref:  (M, 1)          conv1 bias
    w2_ref:  (1, M)          conv2 1x1 weight (row layout, no bias)
    wfc_ref: (M, Kpad)       fc weight, pre-transposed + lane-padded to 128
    bfc_ref: (1, Kpad)       fc bias, lane-padded
    out_ref: (1, 1, Kpad)    logits for this group
    sp_ref:  (seg, spatial)  VMEM scratch - per-sample score staging
    ar_ref:  (1, L)          VMEM scratch - attention weights back in h's lane order
    """
    x = x_ref[0]                                                  # (C, L)
    w1 = w1_ref[...]                                              # (M, C)

    # --- conv1 (1x1) + tanh: ONE lane-dense MXU matmul over the whole group ---
    h = jnp.dot(w1, x, preferred_element_type=jnp.float32)        # (M, L)
    h = jnp.tanh(h + b1_ref[...])                                 # (M, L)

    # --- conv2 (1x1 -> 1 channel) attention scores, also on the (idle) MXU ----
    s_row = jnp.dot(w2_ref[...], h, preferred_element_type=jnp.float32)  # (1, L)

    # --- per-sample softmax over the `spatial` positions -----------------------
    # Stage the 6.4 KB score row into (seg, spatial) so the softmax axis is the
    # lane axis of a small dense tile (static slice/stores only).
    for si in range(seg):
        sp_ref[si:si + 1, :] = s_row[0:1, si * spatial:(si + 1) * spatial]
    s2 = sp_ref[...]                                              # (seg, P)
    s2 = s2 - jnp.max(s2, axis=1, keepdims=True)
    e2 = jnp.exp(s2)
    a2 = e2 / jnp.sum(e2, axis=1, keepdims=True)                  # (seg, P)
    # back to h's lane ordering
    for si in range(seg):
        ar_ref[0:1, si * spatial:(si + 1) * spatial] = a2[si:si + 1, :]
    a_row = ar_ref[...]                                           # (1, L)

    # --- attention pooling fused with the group mean ---------------------------
    # gm[m] = (1/seg) * sum_l h[m, l] * a[l]  (dense-lane VPU multiply + reduce)
    gm = jnp.sum(h * a_row, axis=1, keepdims=True) * (1.0 / seg)  # (M, 1)

    # --- final FC (Linear) on a lane-dense, 128-padded output ------------------
    logits = jnp.sum(wfc_ref[...] * gm, axis=0, keepdims=True) + bfc_ref[...]  # (1, Kpad)
    out_ref[0] = logits.astype(out_ref.dtype)


@functools.partial(jax.jit, static_argnames=("training",))
def top_attention_forward(x_btchw, params, training=False):
    if training:
        # TODO(synk): training path (group size 5 + stochastic dropout) not implemented.
        raise NotImplementedError("TopAttention Pallas kernel implements eval semantics only.")

    B, T, C, H, W = x_btchw.shape
    N = B * T
    P = H * W
    seg = 25                                   # eval mode: torch.split(x, 25)
    assert N % seg == 0, (N, seg)
    G = N // seg
    L = seg * P

    w1 = params["w1"]                          # (M, C)   PyTorch conv1 weight (squeezed)
    M = w1.shape[0]
    K = params["wfc"].shape[0]
    assert w1.shape[1] == C, (w1.shape, C)
    assert params["wfc"].shape[1] == M, (params["wfc"].shape, M)
    # The original module's fc = Linear(in_channels, K) implicitly requires this.
    assert M == C, ("TopAttention requires mid_channels == in_channels", M, C)

    Kpad = ((K + 127) // 128) * 128

    # Lane-dense activation layout: (G, C, seg*P). One cheap wrapper-side
    # transpose (single HBM pass over ~N*C*P*4 bytes) buys full-lane vregs and a
    # single MXU matmul per group inside the kernel.
    x_g = (x_btchw.astype(jnp.float32)
           .reshape(G, seg, C, P)
           .transpose(0, 2, 1, 3)
           .reshape(G, C, L))

    w1f = w1.astype(jnp.float32)                                    # (M, C)
    b1 = params["b1"].astype(jnp.float32).reshape(M, 1)             # (M, 1)
    w2 = params["w2"].astype(jnp.float32).reshape(1, M)             # (1, M)
    wfc = params["wfc"].astype(jnp.float32).T                       # (M, K)
    wfc = jnp.pad(wfc, ((0, 0), (0, Kpad - K)))                     # (M, Kpad)
    bfc = jnp.pad(params["bfc"].astype(jnp.float32), (0, Kpad - K)).reshape(1, Kpad)

    flops = 2 * G * (M * C * L + 2 * M * L + M * Kpad)
    transcendentals = G * (M * L + L)
    bytes_accessed = 4 * (G * C * L + M * C + 2 * M + M * Kpad + Kpad + G * Kpad)

    kernel = functools.partial(top_attention_kernel, seg=seg, spatial=P)
    out = pl.pallas_call(
        kernel,
        out_shape=jax.ShapeDtypeStruct((G, 1, Kpad), jnp.float32),
        grid=(G,),
        in_specs=[
            pl.BlockSpec((1, C, L), lambda g: (g, 0, 0)),
            pl.BlockSpec((M, C), lambda g: (0, 0)),
            pl.BlockSpec((M, 1), lambda g: (0, 0)),
            pl.BlockSpec((1, M), lambda g: (0, 0)),
            pl.BlockSpec((M, Kpad), lambda g: (0, 0)),
            pl.BlockSpec((1, Kpad), lambda g: (0, 0)),
        ],
        out_specs=pl.BlockSpec((1, 1, Kpad), lambda g: (g, 0, 0)),
        scratch_shapes=[
            pltpu.VMEM((seg, P), jnp.float32),
            pltpu.VMEM((1, L), jnp.float32),
        ],
        compiler_params=pltpu.CompilerParams(
            dimension_semantics=("parallel",)),
        cost_estimate=pl.CostEstimate(
            flops=flops, transcendentals=transcendentals,
            bytes_accessed=bytes_accessed),
    )(x_g, w1f, b1, w2, wfc, bfc)

    return out[:, 0, :K]                                            # (G, K)


if __name__ == "__main__":
    in_channels = 32
    mid_channels = 32          # must equal in_channels (fc = Linear(in_channels, K))
    num_classes = 101
    B, T, H, W = 2, 25, 8, 8   # eval mode: N = B*T must be a multiple of 25

    key = jax.random.PRNGKey(0)
    ks = jax.random.split(key, 6)
    x = jax.random.normal(ks[0], (B, T, in_channels, H, W), jnp.float32)
    # Parameters in PyTorch-native layouts (1x1 conv weights squeezed, fc as (K, M)).
    params = {
        "w1": 0.1 * jax.random.normal(ks[1], (mid_channels, in_channels), jnp.float32),
        "b1": 0.1 * jax.random.normal(ks[2], (mid_channels,), jnp.float32),
        "w2": 0.1 * jax.random.normal(ks[3], (1, mid_channels), jnp.float32),
        "wfc": 0.1 * jax.random.normal(ks[4], (num_classes, mid_channels), jnp.float32),
        "bfc": 0.1 * jax.random.normal(ks[5], (num_classes,), jnp.float32),
    }

    out = jax.block_until_ready(top_attention_forward(x, params, training=False))

    # pure-JAX reference (eval semantics of TopAttention.forward)
    N = B * T
    P = H * W
    xr = x.reshape(N, in_channels, P)                                   # (N, C, P)
    h = jnp.tanh(jnp.einsum("mc,ncp->nmp", params["w1"], xr)
                 + params["b1"][None, :, None])                         # (N, M, P)
    a = jax.nn.softmax(
        jnp.einsum("om,nmp->nop", params["w2"], h)[:, 0, :], axis=-1)   # (N, P)
    feats = jnp.einsum("nmp,np->nm", h, a)                              # (N, M)
    gm = feats.reshape(N // 25, 25, mid_channels).mean(axis=1)          # (G, M)
    ref = gm @ params["wfc"].T + params["bfc"][None, :]                 # (G, K)

    assert out.shape == (N // 25, num_classes), out.shape
    err = float(jnp.max(jnp.abs(out - ref)))
    assert jnp.allclose(out, ref, atol=1e-4, rtol=1e-4), err
    print("KERNEL_OK")
</pallas_src>

<mosaic_0001>
module attributes {stable_mosaic.version = 11 : i64} {
  func.func @top_attention_kernel(%arg0: i32, %arg1: memref<1x32x1600xf32, #tpu.memory_space<vmem>>, %arg2: memref<32x32xf32, #tpu.memory_space<vmem>>, %arg3: memref<32x1xf32, #tpu.memory_space<vmem>>, %arg4: memref<1x32xf32, #tpu.memory_space<vmem>>, %arg5: memref<32x128xf32, #tpu.memory_space<vmem>>, %arg6: memref<1x128xf32, #tpu.memory_space<vmem>>, %arg7: memref<1x1x128xf32, #tpu.memory_space<vmem>>, %arg8: memref<25x64xf32, #tpu.memory_space<vmem>>, %arg9: memref<1x1600xf32, #tpu.memory_space<vmem>>) attributes {dimension_semantics = [#tpu.dimension_semantics<parallel>], iteration_bounds = array<i64: 2>, scalar_prefetch = 0 : i64, scratch_operands = 2 : i64, tpu.core_type = #tpu.core_type<tc>, window_params = [{transform_indices = @transform_0, window_bounds = array<i64: 1, 32, 1600>}, {pipeline_mode = #tpu.pipeline_mode<synchronous>, transform_indices = @transform_1, window_bounds = array<i64: 32, 32>}, {pipeline_mode = #tpu.pipeline_mode<synchronous>, transform_indices = @transform_2, window_bounds = array<i64: 32, 1>}, {pipeline_mode = #tpu.pipeline_mode<synchronous>, transform_indices = @transform_3, window_bounds = array<i64: 1, 32>}, {pipeline_mode = #tpu.pipeline_mode<synchronous>, transform_indices = @transform_4, window_bounds = array<i64: 32, 128>}, {pipeline_mode = #tpu.pipeline_mode<synchronous>, transform_indices = @transform_5, window_bounds = array<i64: 1, 128>}, {transform_indices = @transform_6, window_bounds = array<i64: 1, 1, 128>}]} {
    %c0 = arith.constant 0 : index
    %c0_0 = arith.constant 0 : index
    %c0_1 = arith.constant 0 : index
    %0 = vector.load %arg1[%c0, %c0_0, %c0_1] : memref<1x32x1600xf32, #tpu.memory_space<vmem>>, vector<1x32x1600xf32>
    %1 = vector.shape_cast %0 : vector<1x32x1600xf32> to vector<32x1600xf32>
    %c0_2 = arith.constant 0 : index
    %c0_3 = arith.constant 0 : index
    %2 = vector.load %arg2[%c0_2, %c0_3] : memref<32x32xf32, #tpu.memory_space<vmem>>, vector<32x32xf32>
    %cst = arith.constant dense<0.000000e+00> : vector<32x1600xf32>
    %3 = tpu.matmul %2, %1, %cst {dimension_numbers = #tpu.dot_dimension_numbers<[1], [0], [0], [1], [0, 0, 1, 1], [], []>} : vector<32x32xf32>, vector<32x1600xf32>, vector<32x1600xf32> -> vector<32x1600xf32>
    %c0_4 = arith.constant 0 : index
    %c0_5 = arith.constant 0 : index
    %4 = vector.load %arg3[%c0_4, %c0_5] : memref<32x1xf32, #tpu.memory_space<vmem>>, vector<32x1xf32>
    %5 = vector.broadcast %4 : vector<32x1xf32> to vector<32x1600xf32>
    %6 = arith.addf %3, %5 : vector<32x1600xf32>
    %7 = math.tanh %6 : vector<32x1600xf32>
    %c0_6 = arith.constant 0 : index
    %c0_7 = arith.constant 0 : index
    %8 = vector.load %arg4[%c0_6, %c0_7] : memref<1x32xf32, #tpu.memory_space<vmem>>, vector<1x32xf32>
    %cst_8 = arith.constant dense<0.000000e+00> : vector<1x1600xf32>
    %9 = tpu.matmul %8, %7, %cst_8 {dimension_numbers = #tpu.dot_dimension_numbers<[1], [0], [0], [1], [0, 0, 1, 1], [], []>} : vector<1x32xf32>, vector<32x1600xf32>, vector<1x1600xf32> -> vector<1x1600xf32>
    %10 = vector.extract_strided_slice %9 {offsets = [0, 0], sizes = [1, 64], strides = [1, 1]} : vector<1x1600xf32> to vector<1x64xf32>
    %c0_9 = arith.constant 0 : index
    %c0_10 = arith.constant 0 : index
    %11 = vector.load %arg8[%c0_9, %c0_10] : memref<25x64xf32, #tpu.memory_space<vmem>>, vector<1x64xf32>
    tpu.vector_store %arg8[%c0_9, %c0_10], %10 {strides = array<i32>} : memref<25x64xf32, #tpu.memory_space<vmem>>, vector<1x64xf32>,
    %12 = vector.extract_strided_slice %9 {offsets = [0, 64], sizes = [1, 64], strides = [1, 1]} : vector<1x1600xf32> to vector<1x64xf32>
    %c1 = arith.constant 1 : index
    %c0_11 = arith.constant 0 : index
    %13 = vector.load %arg8[%c1, %c0_11] : memref<25x64xf32, #tpu.memory_space<vmem>>, vector<1x64xf32>
    tpu.vector_store %arg8[%c1, %c0_11], %12 {strides = array<i32>} : memref<25x64xf32, #tpu.memory_space<vmem>>, vector<1x64xf32>,
    %14 = vector.extract_strided_slice %9 {offsets = [0, 128], sizes = [1, 64], strides = [1, 1]} : vector<1x1600xf32> to vector<1x64xf32>
    %c2 = arith.constant 2 : index
    %c0_12 = arith.constant 0 : index
    %15 = vector.load %arg8[%c2, %c0_12] : memref<25x64xf32, #tpu.memory_space<vmem>>, vector<1x64xf32>
    tpu.vector_store %arg8[%c2, %c0_12], %14 {strides = array<i32>} : memref<25x64xf32, #tpu.memory_space<vmem>>, vector<1x64xf32>,
    %16 = vector.extract_strided_slice %9 {offsets = [0, 192], sizes = [1, 64], strides = [1, 1]} : vector<1x1600xf32> to vector<1x64xf32>
    %c3 = arith.constant 3 : index
    %c0_13 = arith.constant 0 : index
    %17 = vector.load %arg8[%c3, %c0_13] : memref<25x64xf32, #tpu.memory_space<vmem>>, vector<1x64xf32>
    tpu.vector_store %arg8[%c3, %c0_13], %16 {strides = array<i32>} : memref<25x64xf32, #tpu.memory_space<vmem>>, vector<1x64xf32>,
    %18 = vector.extract_strided_slice %9 {offsets = [0, 256], sizes = [1, 64], strides = [1, 1]} : vector<1x1600xf32> to vector<1x64xf32>
    %c4 = arith.constant 4 : index
    %c0_14 = arith.constant 0 : index
    %19 = vector.load %arg8[%c4, %c0_14] : memref<25x64xf32, #tpu.memory_space<vmem>>, vector<1x64xf32>
    tpu.vector_store %arg8[%c4, %c0_14], %18 {strides = array<i32>} : memref<25x64xf32, #tpu.memory_space<vmem>>, vector<1x64xf32>,
    %20 = vector.extract_strided_slice %9 {offsets = [0, 320], sizes = [1, 64], strides = [1, 1]} : vector<1x1600xf32> to vector<1x64xf32>
    %c5 = arith.constant 5 : index
    %c0_15 = arith.constant 0 : index
    %21 = vector.load %arg8[%c5, %c0_15] : memref<25x64xf32, #tpu.memory_space<vmem>>, vector<1x64xf32>
    tpu.vector_store %arg8[%c5, %c0_15], %20 {strides = array<i32>} : memref<25x64xf32, #tpu.memory_space<vmem>>, vector<1x64xf32>,
    %22 = vector.extract_strided_slice %9 {offsets = [0, 384], sizes = [1, 64], strides = [1, 1]} : vector<1x1600xf32> to vector<1x64xf32>
    %c6 = arith.constant 6 : index
    %c0_16 = arith.constant 0 : index
    %23 = vector.load %arg8[%c6, %c0_16] : memref<25x64xf32, #tpu.memory_space<vmem>>, vector<1x64xf32>
    tpu.vector_store %arg8[%c6, %c0_16], %22 {strides = array<i32>} : memref<25x64xf32, #tpu.memory_space<vmem>>, vector<1x64xf32>,
    %24 = vector.extract_strided_slice %9 {offsets = [0, 448], sizes = [1, 64], strides = [1, 1]} : vector<1x1600xf32> to vector<1x64xf32>
    %c7 = arith.constant 7 : index
    %c0_17 = arith.constant 0 : index
    %25 = vector.load %arg8[%c7, %c0_17] : memref<25x64xf32, #tpu.memory_space<vmem>>, vector<1x64xf32>
    tpu.vector_store %arg8[%c7, %c0_17], %24 {strides = array<i32>} : memref<25x64xf32, #tpu.memory_space<vmem>>, vector<1x64xf32>,
    %26 = vector.extract_strided_slice %9 {offsets = [0, 512], sizes = [1, 64], strides = [1, 1]} : vector<1x1600xf32> to vector<1x64xf32>
    %c8 = arith.constant 8 : index
    %c0_18 = arith.constant 0 : index
    %27 = vector.load %arg8[%c8, %c0_18] : memref<25x64xf32, #tpu.memory_space<vmem>>, vector<1x64xf32>
    tpu.vector_store %arg8[%c8, %c0_18], %26 {strides = array<i32>} : memref<25x64xf32, #tpu.memory_space<vmem>>, vector<1x64xf32>,
    %28 = vector.extract_strided_slice %9 {offsets = [0, 576], sizes = [1, 64], strides = [1, 1]} : vector<1x1600xf32> to vector<1x64xf32>
    %c9 = arith.constant 9 : index
    %c0_19 = arith.constant 0 : index
    %29 = vector.load %arg8[%c9, %c0_19] : memref<25x64xf32, #tpu.memory_space<vmem>>, vector<1x64xf32>
    tpu.vector_store %arg8[%c9, %c0_19], %28 {strides = array<i32>} : memref<25x64xf32, #tpu.memory_space<vmem>>, vector<1x64xf32>,
    %30 = vector.extract_strided_slice %9 {offsets = [0, 640], sizes = [1, 64], strides = [1, 1]} : vector<1x1600xf32> to vector<1x64xf32>
    %c10 = arith.constant 10 : index
    %c0_20 = arith.constant 0 : index
    %31 = vector.load %arg8[%c10, %c0_20] : memref<25x64xf32, #tpu.memory_space<vmem>>, vector<1x64xf32>
    tpu.vector_store %arg8[%c10, %c0_20], %30 {strides = array<i32>} : memref<25x64xf32, #tpu.memory_space<vmem>>, vector<1x64xf32>,
    %32 = vector.extract_strided_slice %9 {offsets = [0, 704], sizes = [1, 64], strides = [1, 1]} : vector<1x1600xf32> to vector<1x64xf32>
    %c11 = arith.constant 11 : index
    %c0_21 = arith.constant 0 : index
    %33 = vector.load %arg8[%c11, %c0_21] : memref<25x64xf32, #tpu.memory_space<vmem>>, vector<1x64xf32>
    tpu.vector_store %arg8[%c11, %c0_21], %32 {strides = array<i32>} : memref<25x64xf32, #tpu.memory_space<vmem>>, vector<1x64xf32>,
    %34 = vector.extract_strided_slice %9 {offsets = [0, 768], sizes = [1, 64], strides = [1, 1]} : vector<1x1600xf32> to vector<1x64xf32>
    %c12 = arith.constant 12 : index
    %c0_22 = arith.constant 0 : index
    %35 = vector.load %arg8[%c12, %c0_22] : memref<25x64xf32, #tpu.memory_space<vmem>>, vector<1x64xf32>
    tpu.vector_store %arg8[%c12, %c0_22], %34 {strides = array<i32>} : memref<25x64xf32, #tpu.memory_space<vmem>>, vector<1x64xf32>,
    %36 = vector.extract_strided_slice %9 {offsets = [0, 832], sizes = [1, 64], strides = [1, 1]} : vector<1x1600xf32> to vector<1x64xf32>
    %c13 = arith.constant 13 : index
    %c0_23 = arith.constant 0 : index
    %37 = vector.load %arg8[%c13, %c0_23] : memref<25x64xf32, #tpu.memory_space<vmem>>, vector<1x64xf32>
    tpu.vector_store %arg8[%c13, %c0_23], %36 {strides = array<i32>} : memref<25x64xf32, #tpu.memory_space<vmem>>, vector<1x64xf32>,
    %38 = vector.extract_strided_slice %9 {offsets = [0, 896], sizes = [1, 64], strides = [1, 1]} : vector<1x1600xf32> to vector<1x64xf32>
    %c14 = arith.constant 14 : index
    %c0_24 = arith.constant 0 : index
    %39 = vector.load %arg8[%c14, %c0_24] : memref<25x64xf32, #tpu.memory_space<vmem>>, vector<1x64xf32>
    tpu.vector_store %arg8[%c14, %c0_24], %38 {strides = array<i32>} : memref<25x64xf32, #tpu.memory_space<vmem>>, vector<1x64xf32>,
    %40 = vector.extract_strided_slice %9 {offsets = [0, 960], sizes = [1, 64], strides = [1, 1]} : vector<1x1600xf32> to vector<1x64xf32>
    %c15 = arith.constant 15 : index
    %c0_25 = arith.constant 0 : index
    %41 = vector.load %arg8[%c15, %c0_25] : memref<25x64xf32, #tpu.memory_space<vmem>>, vector<1x64xf32>
    tpu.vector_store %arg8[%c15, %c0_25], %40 {strides = array<i32>} : memref<25x64xf32, #tpu.memory_space<vmem>>, vector<1x64xf32>,
    %42 = vector.extract_strided_slice %9 {offsets = [0, 1024], sizes = [1, 64], strides = [1, 1]} : vector<1x1600xf32> to vector<1x64xf32>
    %c16 = arith.constant 16 : index
    %c0_26 = arith.constant 0 : index
    %43 = vector.load %arg8[%c16, %c0_26] : memref<25x64xf32, #tpu.memory_space<vmem>>, vector<1x64xf32>
    tpu.vector_store %arg8[%c16, %c0_26], %42 {strides = array<i32>} : memref<25x64xf32, #tpu.memory_space<vmem>>, vector<1x64xf32>,
    %44 = vector.extract_strided_slice %9 {offsets = [0, 1088], sizes = [1, 64], strides = [1, 1]} : vector<1x1600xf32> to vector<1x64xf32>
    %c17 = arith.constant 17 : index
    %c0_27 = arith.constant 0 : index
    %45 = vector.load %arg8[%c17, %c0_27] : memref<25x64xf32, #tpu.memory_space<vmem>>, vector<1x64xf32>
    tpu.vector_store %arg8[%c17, %c0_27], %44 {strides = array<i32>} : memref<25x64xf32, #tpu.memory_space<vmem>>, vector<1x64xf32>,
    %46 = vector.extract_strided_slice %9 {offsets = [0, 1152], sizes = [1, 64], strides = [1, 1]} : vector<1x1600xf32> to vector<1x64xf32>
    %c18 = arith.constant 18 : index
    %c0_28 = arith.constant 0 : index
    %47 = vector.load %arg8[%c18, %c0_28] : memref<25x64xf32, #tpu.memory_space<vmem>>, vector<1x64xf32>
    tpu.vector_store %arg8[%c18, %c0_28], %46 {strides = array<i32>} : memref<25x64xf32, #tpu.memory_space<vmem>>, vector<1x64xf32>,
    %48 = vector.extract_strided_slice %9 {offsets = [0, 1216], sizes = [1, 64], strides = [1, 1]} : vector<1x1600xf32> to vector<1x64xf32>
    %c19 = arith.constant 19 : index
    %c0_29 = arith.constant 0 : index
    %49 = vector.load %arg8[%c19, %c0_29] : memref<25x64xf32, #tpu.memory_space<vmem>>, vector<1x64xf32>
    tpu.vector_store %arg8[%c19, %c0_29], %48 {strides = array<i32>} : memref<25x64xf32, #tpu.memory_space<vmem>>, vector<1x64xf32>,
    %50 = vector.extract_strided_slice %9 {offsets = [0, 1280], sizes = [1, 64], strides = [1, 1]} : vector<1x1600xf32> to vector<1x64xf32>
    %c20 = arith.constant 20 : index
    %c0_30 = arith.constant 0 : index
    %51 = vector.load %arg8[%c20, %c0_30] : memref<25x64xf32, #tpu.memory_space<vmem>>, vector<1x64xf32>
    tpu.vector_store %arg8[%c20, %c0_30], %50 {strides = array<i32>} : memref<25x64xf32, #tpu.memory_space<vmem>>, vector<1x64xf32>,
    %52 = vector.extract_strided_slice %9 {offsets = [0, 1344], sizes = [1, 64], strides = [1, 1]} : vector<1x1600xf32> to vector<1x64xf32>
    %c21 = arith.constant 21 : index
    %c0_31 = arith.constant 0 : index
    %53 = vector.load %arg8[%c21, %c0_31] : memref<25x64xf32, #tpu.memory_space<vmem>>, vector<1x64xf32>
    tpu.vector_store %arg8[%c21, %c0_31], %52 {strides = array<i32>} : memref<25x64xf32, #tpu.memory_space<vmem>>, vector<1x64xf32>,
    %54 = vector.extract_strided_slice %9 {offsets = [0, 1408], sizes = [1, 64], strides = [1, 1]} : vector<1x1600xf32> to vector<1x64xf32>
    %c22 = arith.constant 22 : index
    %c0_32 = arith.constant 0 : index
    %55 = vector.load %arg8[%c22, %c0_32] : memref<25x64xf32, #tpu.memory_space<vmem>>, vector<1x64xf32>
    tpu.vector_store %arg8[%c22, %c0_32], %54 {strides = array<i32>} : memref<25x64xf32, #tpu.memory_space<vmem>>, vector<1x64xf32>,
    %56 = vector.extract_strided_slice %9 {offsets = [0, 1472], sizes = [1, 64], strides = [1, 1]} : vector<1x1600xf32> to vector<1x64xf32>
    %c23 = arith.constant 23 : index
    %c0_33 = arith.constant 0 : index
    %57 = vector.load %arg8[%c23, %c0_33] : memref<25x64xf32, #tpu.memory_space<vmem>>, vector<1x64xf32>
    tpu.vector_store %arg8[%c23, %c0_33], %56 {strides = array<i32>} : memref<25x64xf32, #tpu.memory_space<vmem>>, vector<1x64xf32>,
    %58 = vector.extract_strided_slice %9 {offsets = [0, 1536], sizes = [1, 64], strides = [1, 1]} : vector<1x1600xf32> to vector<1x64xf32>
    %c24 = arith.constant 24 : index
    %c0_34 = arith.constant 0 : index
    %59 = vector.load %arg8[%c24, %c0_34] : memref<25x64xf32, #tpu.memory_space<vmem>>, vector<1x64xf32>
    tpu.vector_store %arg8[%c24, %c0_34], %58 {strides = array<i32>} : memref<25x64xf32, #tpu.memory_space<vmem>>, vector<1x64xf32>,
    %c0_35 = arith.constant 0 : index
    %c0_36 = arith.constant 0 : index
    %60 = vector.load %arg8[%c0_35, %c0_36] : memref<25x64xf32, #tpu.memory_space<vmem>>, vector<25x64xf32>
    %cst_37 = arith.constant dense<0xFF800000> : vector<25xf32>
    %61 = vector.multi_reduction <maximumf>, %60, %cst_37 [1] : vector<25x64xf32> to vector<25xf32>
    %62 = vector.shape_cast %61 : vector<25xf32> to vector<25x1xf32>
    %63 = vector.broadcast %62 : vector<25x1xf32> to vector<25x64xf32>
    %64 = arith.subf %60, %63 : vector<25x64xf32>
    %65 = math.exp %64 : vector<25x64xf32>
    %cst_38 = arith.constant dense<0.000000e+00> : vector<25xf32>
    %66 = vector.multi_reduction <add>, %65, %cst_38 [1] : vector<25x64xf32> to vector<25xf32>
    %67 = vector.shape_cast %66 : vector<25xf32> to vector<25x1xf32>
    %68 = vector.broadcast %67 : vector<25x1xf32> to vector<25x64xf32>
    %69 = arith.divf %65, %68 : vector<25x64xf32>
    %70 = vector.extract_strided_slice %69 {offsets = [0, 0], sizes = [1, 64], strides = [1, 1]} : vector<25x64xf32> to vector<1x64xf32>
    %c0_39 = arith.constant 0 : index
    %c0_40 = arith.constant 0 : index
    %71 = vector.load %arg9[%c0_39, %c0_40] : memref<1x1600xf32, #tpu.memory_space<vmem>>, vector<1x64xf32>
    tpu.vector_store %arg9[%c0_39, %c0_40], %70 {strides = array<i32>} : memref<1x1600xf32, #tpu.memory_space<vmem>>, vector<1x64xf32>,
    %72 = vector.extract_strided_slice %69 {offsets = [1, 0], sizes = [1, 64], strides = [1, 1]} : vector<25x64xf32> to vector<1x64xf32>
    %c0_41 = arith.constant 0 : index
    %c64 = arith.constant 64 : index
    %73 = vector.load %arg9[%c0_41, %c64] : memref<1x1600xf32, #tpu.memory_space<vmem>>, vector<1x64xf32>
    tpu.vector_store %arg9[%c0_41, %c64], %72 {strides = array<i32>} : memref<1x1600xf32, #tpu.memory_space<vmem>>, vector<1x64xf32>,
    %74 = vector.extract_strided_slice %69 {offsets = [2, 0], sizes = [1, 64], strides = [1, 1]} : vector<25x64xf32> to vector<1x64xf32>
    %c0_42 = arith.constant 0 : index
    %c128 = arith.constant 128 : index
    %75 = vector.load %arg9[%c0_42, %c128] : memref<1x1600xf32, #tpu.memory_space<vmem>>, vector<1x64xf32>
    tpu.vector_store %arg9[%c0_42, %c128], %74 {strides = array<i32>} : memref<1x1600xf32, #tpu.memory_space<vmem>>, vector<1x64xf32>,
    %76 = vector.extract_strided_slice %69 {offsets = [3, 0], sizes = [1, 64], strides = [1, 1]} : vector<25x64xf32> to vector<1x64xf32>
    %c0_43 = arith.constant 0 : index
    %c192 = arith.constant 192 : index
    %77 = vector.load %arg9[%c0_43, %c192] : memref<1x1600xf32, #tpu.memory_space<vmem>>, vector<1x64xf32>
    tpu.vector_store %arg9[%c0_43, %c192], %76 {strides = array<i32>} : memref<1x1600xf32, #tpu.memory_space<vmem>>, vector<1x64xf32>,
    %78 = vector.extract_strided_slice %69 {offsets = [4, 0], sizes = [1, 64], strides = [1, 1]} : vector<25x64xf32> to vector<1x64xf32>
    %c0_44 = arith.constant 0 : index
    %c256 = arith.constant 256 : index
    %79 = vector.load %arg9[%c0_44, %c256] : memref<1x1600xf32, #tpu.memory_space<vmem>>, vector<1x64xf32>
    tpu.vector_store %arg9[%c0_44, %c256], %78 {strides = array<i32>} : memref<1x1600xf32, #tpu.memory_space<vmem>>, vector<1x64xf32>,
    %80 = vector.extract_strided_slice %69 {offsets = [5, 0], sizes = [1, 64], strides = [1, 1]} : vector<25x64xf32> to vector<1x64xf32>
    %c0_45 = arith.constant 0 : index
    %c320 = arith.constant 320 : index
    %81 = vector.load %arg9[%c0_45, %c320] : memref<1x1600xf32, #tpu.memory_space<vmem>>, vector<1x64xf32>
    tpu.vector_store %arg9[%c0_45, %c320], %80 {strides = array<i32>} : memref<1x1600xf32, #tpu.memory_space<vmem>>, vector<1x64xf32>,
    %82 = vector.extract_strided_slice %69 {offsets = [6, 0], sizes = [1, 64], strides = [1, 1]} : vector<25x64xf32> to vector<1x64xf32>
    %c0_46 = arith.constant 0 : index
    %c384 = arith.constant 384 : index
    %83 = vector.load %arg9[%c0_46, %c384] : memref<1x1600xf32, #tpu.memory_space<vmem>>, vector<1x64xf32>
    tpu.vector_store %arg9[%c0_46, %c384], %82 {strides = array<i32>} : memref<1x1600xf32, #tpu.memory_space<vmem>>, vector<1x64xf32>,
    %84 = vector.extract_strided_slice %69 {offsets = [7, 0], sizes = [1, 64], strides = [1, 1]} : vector<25x64xf32> to vector<1x64xf32>
    %c0_47 = arith.constant 0 : index
    %c448 = arith.constant 448 : index
    %85 = vector.load %arg9[%c0_47, %c448] : memref<1x1600xf32, #tpu.memory_space<vmem>>, vector<1x64xf32>
    tpu.vector_store %arg9[%c0_47, %c448], %84 {strides = array<i32>} : memref<1x1600xf32, #tpu.memory_space<vmem>>, vector<1x64xf32>,
    %86 = vector.extract_strided_slice %69 {offsets = [8, 0], sizes = [1, 64], strides = [1, 1]} : vector<25x64xf32> to vector<1x64xf32>
    %c0_48 = arith.constant 0 : index
    %c512 = arith.constant 512 : index
    %87 = vector.load %arg9[%c0_48, %c512] : memref<1x1600xf32, #tpu.memory_space<vmem>>, vector<1x64xf32>
    tpu.vector_store %arg9[%c0_48, %c512], %86 {strides = array<i32>} : memref<1x1600xf32, #tpu.memory_space<vmem>>, vector<1x64xf32>,
    %88 = vector.extract_strided_slice %69 {offsets = [9, 0], sizes = [1, 64], strides = [1, 1]} : vector<25x64xf32> to vector<1x64xf32>
    %c0_49 = arith.constant 0 : index
    %c576 = arith.constant 576 : index
    %89 = vector.load %arg9[%c0_49, %c576] : memref<1x1600xf32, #tpu.memory_space<vmem>>, vector<1x64xf32>
    tpu.vector_store %arg9[%c0_49, %c576], %88 {strides = array<i32>} : memref<1x1600xf32, #tpu.memory_space<vmem>>, vector<1x64xf32>,
    %90 = vector.extract_strided_slice %69 {offsets = [10, 0], sizes = [1, 64], strides = [1, 1]} : vector<25x64xf32> to vector<1x64xf32>
    %c0_50 = arith.constant 0 : index
    %c640 = arith.constant 640 : index
    %91 = vector.load %arg9[%c0_50, %c640] : memref<1x1600xf32, #tpu.memory_space<vmem>>, vector<1x64xf32>
    tpu.vector_store %arg9[%c0_50, %c640], %90 {strides = array<i32>} : memref<1x1600xf32, #tpu.memory_space<vmem>>, vector<1x64xf32>,
    %92 = vector.extract_strided_slice %69 {offsets = [11, 0], sizes = [1, 64], strides = [1, 1]} : vector<25x64xf32> to vector<1x64xf32>
    %c0_51 = arith.constant 0 : index
    %c704 = arith.constant 704 : index
    %93 = vector.load %arg9[%c0_51, %c704] : memref<1x1600xf32, #tpu.memory_space<vmem>>, vector<1x64xf32>
    tpu.vector_store %arg9[%c0_51, %c704], %92 {strides = array<i32>} : memref<1x1600xf32, #tpu.memory_space<vmem>>, vector<1x64xf32>,
    %94 = vector.extract_strided_slice %69 {offsets = [12, 0], sizes = [1, 64], strides = [1, 1]} : vector<25x64xf32> to vector<1x64xf32>
    %c0_52 = arith.constant 0 : index
    %c768 = arith.constant 768 : index
    %95 = vector.load %arg9[%c0_52, %c768] : memref<1x1600xf32, #tpu.memory_space<vmem>>, vector<1x64xf32>
    tpu.vector_store %arg9[%c0_52, %c768], %94 {strides = array<i32>} : memref<1x1600xf32, #tpu.memory_space<vmem>>, vector<1x64xf32>,
    %96 = vector.extract_strided_slice %69 {offsets = [13, 0], sizes = [1, 64], strides = [1, 1]} : vector<25x64xf32> to vector<1x64xf32>
    %c0_53 = arith.constant 0 : index
    %c832 = arith.constant 832 : index
    %97 = vector.load %arg9[%c0_53, %c832] : memref<1x1600xf32, #tpu.memory_space<vmem>>, vector<1x64xf32>
    tpu.vector_store %arg9[%c0_53, %c832], %96 {strides = array<i32>} : memref<1x1600xf32, #tpu.memory_space<vmem>>, vector<1x64xf32>,
    %98 = vector.extract_strided_slice %69 {offsets = [14, 0], sizes = [1, 64], strides = [1, 1]} : vector<25x64xf32> to vector<1x64xf32>
    %c0_54 = arith.constant 0 : index
    %c896 = arith.constant 896 : index
    %99 = vector.load %arg9[%c0_54, %c896] : memref<1x1600xf32, #tpu.memory_space<vmem>>, vector<1x64xf32>
    tpu.vector_store %arg9[%c0_54, %c896], %98 {strides = array<i32>} : memref<1x1600xf32, #tpu.memory_space<vmem>>, vector<1x64xf32>,
    %100 = vector.extract_strided_slice %69 {offsets = [15, 0], sizes = [1, 64], strides = [1, 1]} : vector<25x64xf32> to vector<1x64xf32>
    %c0_55 = arith.constant 0 : index
    %c960 = arith.constant 960 : index
    %101 = vector.load %arg9[%c0_55, %c960] : memref<1x1600xf32, #tpu.memory_space<vmem>>, vector<1x64xf32>
    tpu.vector_store %arg9[%c0_55, %c960], %100 {strides = array<i32>} : memref<1x1600xf32, #tpu.memory_space<vmem>>, vector<1x64xf32>,
    %102 = vector.extract_strided_slice %69 {offsets = [16, 0], sizes = [1, 64], strides = [1, 1]} : vector<25x64xf32> to vector<1x64xf32>
    %c0_56 = arith.constant 0 : index
    %c1024 = arith.constant 1024 : index
    %103 = vector.load %arg9[%c0_56, %c1024] : memref<1x1600xf32, #tpu.memory_space<vmem>>, vector<1x64xf32>
    tpu.vector_store %arg9[%c0_56, %c1024], %102 {strides = array<i32>} : memref<1x1600xf32, #tpu.memory_space<vmem>>, vector<1x64xf32>,
    %104 = vector.extract_strided_slice %69 {offsets = [17, 0], sizes = [1, 64], strides = [1, 1]} : vector<25x64xf32> to vector<1x64xf32>
    %c0_57 = arith.constant 0 : index
    %c1088 = arith.constant 1088 : index
    %105 = vector.load %arg9[%c0_57, %c1088] : memref<1x1600xf32, #tpu.memory_space<vmem>>, vector<1x64xf32>
    tpu.vector_store %arg9[%c0_57, %c1088], %104 {strides = array<i32>} : memref<1x1600xf32, #tpu.memory_space<vmem>>, vector<1x64xf32>,
    %106 = vector.extract_strided_slice %69 {offsets = [18, 0], sizes = [1, 64], strides = [1, 1]} : vector<25x64xf32> to vector<1x64xf32>
    %c0_58 = arith.constant 0 : index
    %c1152 = arith.constant 1152 : index
    %107 = vector.load %arg9[%c0_58, %c1152] : memref<1x1600xf32, #tpu.memory_space<vmem>>, vector<1x64xf32>
    tpu.vector_store %arg9[%c0_58, %c1152], %106 {strides = array<i32>} : memref<1x1600xf32, #tpu.memory_space<vmem>>, vector<1x64xf32>,
    %108 = vector.extract_strided_slice %69 {offsets = [19, 0], sizes = [1, 64], strides = [1, 1]} : vector<25x64xf32> to vector<1x64xf32>
    %c0_59 = arith.constant 0 : index
    %c1216 = arith.constant 1216 : index
    %109 = vector.load %arg9[%c0_59, %c1216] : memref<1x1600xf32, #tpu.memory_space<vmem>>, vector<1x64xf32>
    tpu.vector_store %arg9[%c0_59, %c1216], %108 {strides = array<i32>} : memref<1x1600xf32, #tpu.memory_space<vmem>>, vector<1x64xf32>,
    %110 = vector.extract_strided_slice %69 {offsets = [20, 0], sizes = [1, 64], strides = [1, 1]} : vector<25x64xf32> to vector<1x64xf32>
    %c0_60 = arith.constant 0 : index
    %c1280 = arith.constant 1280 : index
    %111 = vector.load %arg9[%c0_60, %c1280] : memref<1x1600xf32, #tpu.memory_space<vmem>>, vector<1x64xf32>
    tpu.vector_store %arg9[%c0_60, %c1280], %110 {strides = array<i32>} : memref<1x1600xf32, #tpu.memory_space<vmem>>, vector<1x64xf32>,
    %112 = vector.extract_strided_slice %69 {offsets = [21, 0], sizes = [1, 64], strides = [1, 1]} : vector<25x64xf32> to vector<1x64xf32>
    %c0_61 = arith.constant 0 : index
    %c1344 = arith.constant 1344 : index
    %113 = vector.load %arg9[%c0_61, %c1344] : memref<1x1600xf32, #tpu.memory_space<vmem>>, vector<1x64xf32>
    tpu.vector_store %arg9[%c0_61, %c1344], %112 {strides = array<i32>} : memref<1x1600xf32, #tpu.memory_space<vmem>>, vector<1x64xf32>,
    %114 = vector.extract_strided_slice %69 {offsets = [22, 0], sizes = [1, 64], strides = [1, 1]} : vector<25x64xf32> to vector<1x64xf32>
    %c0_62 = arith.constant 0 : index
    %c1408 = arith.constant 1408 : index
    %115 = vector.load %arg9[%c0_62, %c1408] : memref<1x1600xf32, #tpu.memory_space<vmem>>, vector<1x64xf32>
    tpu.vector_store %arg9[%c0_62, %c1408], %114 {strides = array<i32>} : memref<1x1600xf32, #tpu.memory_space<vmem>>, vector<1x64xf32>,
    %116 = vector.extract_strided_slice %69 {offsets = [23, 0], sizes = [1, 64], strides = [1, 1]} : vector<25x64xf32> to vector<1x64xf32>
    %c0_63 = arith.constant 0 : index
    %c1472 = arith.constant 1472 : index
    %117 = vector.load %arg9[%c0_63, %c1472] : memref<1x1600xf32, #tpu.memory_space<vmem>>, vector<1x64xf32>
    tpu.vector_store %arg9[%c0_63, %c1472], %116 {strides = array<i32>} : memref<1x1600xf32, #tpu.memory_space<vmem>>, vector<1x64xf32>,
    %118 = vector.extract_strided_slice %69 {offsets = [24, 0], sizes = [1, 64], strides = [1, 1]} : vector<25x64xf32> to vector<1x64xf32>
    %c0_64 = arith.constant 0 : index
    %c1536 = arith.constant 1536 : index
    %119 = vector.load %arg9[%c0_64, %c1536] : memref<1x1600xf32, #tpu.memory_space<vmem>>, vector<1x64xf32>
    tpu.vector_store %arg9[%c0_64, %c1536], %118 {strides = array<i32>} : memref<1x1600xf32, #tpu.memory_space<vmem>>, vector<1x64xf32>,
    %c0_65 = arith.constant 0 : index
    %c0_66 = arith.constant 0 : index
    %120 = vector.load %arg9[%c0_65, %c0_66] : memref<1x1600xf32, #tpu.memory_space<vmem>>, vector<1x1600xf32>
    %121 = vector.broadcast %120 : vector<1x1600xf32> to vector<32x1600xf32>
    %122 = arith.mulf %7, %121 : vector<32x1600xf32>
    %cst_67 = arith.constant dense<0.000000e+00> : vector<32xf32>
    %123 = vector.multi_reduction <add>, %122, %cst_67 [1] : vector<32x1600xf32> to vector<32xf32>
    %124 = vector.shape_cast %123 : vector<32xf32> to vector<32x1xf32>
    %cst_68 = arith.constant 4.000000e-02 : f32
    %125 = vector.broadcast %cst_68 : f32 to vector<32x1xf32>
    %126 = arith.mulf %124, %125 : vector<32x1xf32>
    %c0_69 = arith.constant 0 : index
    %c0_70 = arith.constant 0 : index
    %127 = vector.load %arg5[%c0_69, %c0_70] : memref<32x128xf32, #tpu.memory_space<vmem>>, vector<32x128xf32>
    %128 = vector.broadcast %126 : vector<32x1xf32> to vector<32x128xf32>
    %129 = arith.mulf %127, %128 : vector<32x128xf32>
    %cst_71 = arith.constant dense<0.000000e+00> : vector<128xf32>
    %130 = vector.multi_reduction <add>, %129, %cst_71 [0] : vector<32x128xf32> to vector<128xf32>
    %131 = vector.shape_cast %130 : vector<128xf32> to vector<1x128xf32>
    %c0_72 = arith.constant 0 : index
    %c0_73 = arith.constant 0 : index
    %132 = vector.load %arg6[%c0_72, %c0_73] : memref<1x128xf32, #tpu.memory_space<vmem>>, vector<1x128xf32>
    %133 = arith.addf %131, %132 : vector<1x128xf32>
    %c0_74 = arith.constant 0 : index
    %c0_75 = arith.constant 0 : index
    %c0_76 = arith.constant 0 : index
    %134 = vector.load %arg7[%c0_74, %c0_75, %c0_76] : memref<1x1x128xf32, #tpu.memory_space<vmem>>, vector<1x1x128xf32>
    %135 = vector.shape_cast %134 : vector<1x1x128xf32> to vector<1x128xf32>
    %136 = vector.shape_cast %133 : vector<1x128xf32> to vector<1x1x128xf32>
    tpu.vector_store %arg7[%c0_74, %c0_75, %c0_76], %136 {strides = array<i32>} : memref<1x1x128xf32, #tpu.memory_space<vmem>>, vector<1x1x128xf32>,
    return
  }
  func.func @transform_0(%arg0: i32) -> (i32, i32, i32) {
    %c0_i32 = arith.constant 0 : i32
    %c0_i32_0 = arith.constant 0 : i32
    %c0_i32_1 = arith.constant 0 : i32
    return %arg0, %c0_i32, %c0_i32_0 : i32, i32, i32
  }
  func.func @transform_1(%arg0: i32) -> (i32, i32) {
    %c0_i32 = arith.constant 0 : i32
    %c0_i32_0 = arith.constant 0 : i32
    %c0_i32_1 = arith.constant 0 : i32
    return %c0_i32, %c0_i32_0 : i32, i32
  }
  func.func @transform_2(%arg0: i32) -> (i32, i32) {
    %c0_i32 = arith.constant 0 : i32
    %c0_i32_0 = arith.constant 0 : i32
    %c0_i32_1 = arith.constant 0 : i32
    return %c0_i32, %c0_i32_0 : i32, i32
  }
  func.func @transform_3(%arg0: i32) -> (i32, i32) {
    %c0_i32 = arith.constant 0 : i32
    %c0_i32_0 = arith.constant 0 : i32
    %c0_i32_1 = arith.constant 0 : i32
    return %c0_i32, %c0_i32_0 : i32, i32
  }
  func.func @transform_4(%arg0: i32) -> (i32, i32) {
    %c0_i32 = arith.constant 0 : i32
    %c0_i32_0 = arith.constant 0 : i32
    %c0_i32_1 = arith.constant 0 : i32
    return %c0_i32, %c0_i32_0 : i32, i32
  }
  func.func @transform_5(%arg0: i32) -> (i32, i32) {
    %c0_i32 = arith.constant 0 : i32
    %c0_i32_0 = arith.constant 0 : i32
    %c0_i32_1 = arith.constant 0 : i32
    return %c0_i32, %c0_i32_0 : i32, i32
  }
  func.func @transform_6(%arg0: i32) -> (i32, i32, i32) {
    %c0_i32 = arith.constant 0 : i32
    %c0_i32_0 = arith.constant 0 : i32
    %c0_i32_1 = arith.constant 0 : i32
    return %arg0, %c0_i32, %c0_i32_0 : i32, i32, i32
  }
}

</mosaic_0001>

<llo_original>
// kernel: top_attention_forward.1
$region0: #{top_attention_forward.1}
  #allocation0 [shape = 'u32[]', space=smem, size = 0x4, offset = 0x4, fixed_abs, tag = 'smem constant byte address 0x4 - core index']
  #allocation1 [shape = 'u32[144,128]{1,0:T(1,128)}', space=vmem, size = 0x12000, scoped, tag = 'internal scratch']
  #allocation2 [shape = 'f32[25,64]{1,0:T(8,128)}', space=vmem, size = 0x4000, scoped, tag = 'scratch operand']
  #allocation3 [shape = 'f32[1,1600]{1,0:T(1,128)}', space=vmem, size = 0x1a00, scoped, tag = 'scratch operand']
  %s0 = inlined_call_operand.vmem [shape: f32[2,32,1600], index: 0, kind: input, shape index: {}]
  %s1 = inlined_call_operand.vmem [shape: f32[32,32], index: 1, kind: input, shape index: {}]
  %s2 = inlined_call_operand.vmem [shape: f32[32,1], index: 2, kind: input, shape index: {}]
  %s3 = inlined_call_operand.vmem [shape: f32[1,32], index: 3, kind: input, shape index: {}]
  %s4 = inlined_call_operand.vmem [shape: f32[32,128], index: 4, kind: input, shape index: {}]
  %s5 = inlined_call_operand.vmem [shape: f32[1,128], index: 5, kind: input, shape index: {}]
  %s6 = inlined_call_operand.hbm [shape: f32[2,1,128], index: 6, kind: output, shape index: {}]
  %s7 = sld [smem:[#allocation0]]
  $region57: #{top_attention_forward.1} parent=0
    _
  %s9 = ssub.s32 1, %s7
  %s10 = scalar_select 0, %s9, %s7
  $region1: #{top_attention_forward.1} parent=0
    #allocation4 [shape = 'u8[1024]{0}', space=vmem, size = 0x400, scoped, tag = 'output window, operand 0']
    #allocation5 [shape = 's32[2]{0}', space=sflag, size = 0x8, scoped, tag = 'scoped memory for top_attention_forward.1']
    %11 = vsyncpa [#allocation5], 0
    %s12 = scalar_lea.sflag [#allocation5], 1
    %13 = vsyncpa %s12, 0
    loop: start=0, step=1, limit=4
    $region2: #{top_attention_forward.1} parent=1 // loop_pre_header
      _
    $region3: #{top_attention_forward.1} parent=1 // loop_header
      %s15 = sphi 0, %s19
      %p16 = scmp.ge.s32.totalorder %s15, 4
      %s25 = sphi 0, %s27
      %s28 = sphi 0, %s25
      %s29 = sphi 0, %s28
      %s45 = sphi 0, %s29
      %s49 = sphi 0, %s49
      %s51 = sphi 0, %s49
      %s52 = sphi 0, %s51
      %s66 = sphi 0, %s52
      %s70 = sphi 0, %s70
      %s72 = sphi 0, %s70
      %s73 = sphi 0, %s72
      %s87 = sphi 0, %s73
      %s91 = sphi 0, %s91
      %s93 = sphi 0, %s91
      %s94 = sphi 0, %s93
      %s108 = sphi 0, %s94
      %s112 = sphi 0, %s112
      %s114 = sphi 0, %s112
      %s115 = sphi 0, %s114
      %s129 = sphi 0, %s115
      %s133 = sphi 0, %s133
      %s135 = sphi 0, %s133
      %s136 = sphi 0, %s135
      %s150 = sphi 0, %s136
      %s156 = sphi 0, %s158
      %s159 = sphi 0, %s156
      %s160 = sphi 0, %s159
      %s176 = sphi 0, %s160
    $region4: #{top_attention_forward.1} parent=1 // loop_header_branch
      %18 = sbr.rel (%p16) target = $region8
    $region5: #{top_attention_forward.1} parent=1 // loop_body
      %s20 = ssub.s32 %s15, 1
      %s21 = ssub.s32 %s15, 2
      %s22 = sadd.s32 %s15, 1
      %s23 = ssub.s32 %s15, %s22
      %p24 = scmp.eq.s32.totalorder %s23, 0
      %s26 = sadd.s32 %s25, 1
      %s27 = scalar_select %p24, %s25, %s26
      %p30 = pneg %p24
      %p31 = scmp.eq.s32.totalorder %s15, 1
      %p32 = por %p30, %p31
      %p33 = scmp.ne.s32.totalorder %s25, %s28
      %p34 = scmp.eq.s32.totalorder %s15, 0
      %p35 = por %p33, %p34
      %p36 = scmp.ne.s32.totalorder %s25, %s28
      %p37 = scmp.eq.s32.totalorder %s20, 1
      %p38 = por %p36, %p37
      %p39 = scmp.ne.s32.totalorder %s28, %s29
      %p40 = scmp.eq.s32.totalorder %s20, 0
      %p41 = por %p39, %p40
      %p42 = scmp.ne.s32.totalorder %s28, %s29
      %p43 = scmp.eq.s32.totalorder %s21, 1
      %p44 = por %p42, %p43
      %p46 = scmp.ne.s32.totalorder %s29, %s45
      %p47 = scmp.eq.s32.totalorder %s21, 0
      %p48 = por %p46, %p47
      %s50 = sadd.s32 %s49, 1
      %p53 = scmp.eq.s32.totalorder %s15, 1
      %p54 = scmp.ne.s32.totalorder %s49, %s51
      %p55 = scmp.eq.s32.totalorder %s15, 0
      %p56 = por %p54, %p55
      %p57 = scmp.ne.s32.totalorder %s49, %s51
      %p58 = scmp.eq.s32.totalorder %s20, 1
      %p59 = por %p57, %p58
      %p60 = scmp.ne.s32.totalorder %s51, %s52
      %p61 = scmp.eq.s32.totalorder %s20, 0
      %p62 = por %p60, %p61
      %p63 = scmp.ne.s32.totalorder %s51, %s52
      %p64 = scmp.eq.s32.totalorder %s21, 1
      %p65 = por %p63, %p64
      %p67 = scmp.ne.s32.totalorder %s52, %s66
      %p68 = scmp.eq.s32.totalorder %s21, 0
      %p69 = por %p67, %p68
      %s71 = sadd.s32 %s70, 1
      %p74 = scmp.eq.s32.totalorder %s15, 1
      %p75 = scmp.ne.s32.totalorder %s70, %s72
      %p76 = scmp.eq.s32.totalorder %s15, 0
      %p77 = por %p75, %p76
      %p78 = scmp.ne.s32.totalorder %s70, %s72
      %p79 = scmp.eq.s32.totalorder %s20, 1
      %p80 = por %p78, %p79
      %p81 = scmp.ne.s32.totalorder %s72, %s73
      %p82 = scmp.eq.s32.totalorder %s20, 0
      %p83 = por %p81, %p82
      %p84 = scmp.ne.s32.totalorder %s72, %s73
      %p85 = scmp.eq.s32.totalorder %s21, 1
      %p86 = por %p84, %p85
      %p88 = scmp.ne.s32.totalorder %s73, %s87
      %p89 = scmp.eq.s32.totalorder %s21, 0
      %p90 = por %p88, %p89
      %s92 = sadd.s32 %s91, 1
      %p95 = scmp.eq.s32.totalorder %s15, 1
      %p96 = scmp.ne.s32.totalorder %s91, %s93
      %p97 = scmp.eq.s32.totalorder %s15, 0
      %p98 = por %p96, %p97
      %p99 = scmp.ne.s32.totalorder %s91, %s93
      %p100 = scmp.eq.s32.totalorder %s20, 1
      %p101 = por %p99, %p100
      %p102 = scmp.ne.s32.totalorder %s93, %s94
      %p103 = scmp.eq.s32.totalorder %s20, 0
      %p104 = por %p102, %p103
      %p105 = scmp.ne.s32.totalorder %s93, %s94
      %p106 = scmp.eq.s32.totalorder %s21, 1
      %p107 = por %p105, %p106
      %p109 = scmp.ne.s32.totalorder %s94, %s108
      %p110 = scmp.eq.s32.totalorder %s21, 0
      %p111 = por %p109, %p110
      %s113 = sadd.s32 %s112, 1
      %p116 = scmp.eq.s32.totalorder %s15, 1
      %p117 = scmp.ne.s32.totalorder %s112, %s114
      %p118 = scmp.eq.s32.totalorder %s15, 0
      %p119 = por %p117, %p118
      %p120 = scmp.ne.s32.totalorder %s112, %s114
      %p121 = scmp.eq.s32.totalorder %s20, 1
      %p122 = por %p120, %p121
      %p123 = scmp.ne.s32.totalorder %s114, %s115
      %p124 = scmp.eq.s32.totalorder %s20, 0
      %p125 = por %p123, %p124
      %p126 = scmp.ne.s32.totalorder %s114, %s115
      %p127 = scmp.eq.s32.totalorder %s21, 1
      %p128 = por %p126, %p127
      %p130 = scmp.ne.s32.totalorder %s115, %s129
      %p131 = scmp.eq.s32.totalorder %s21, 0
      %p132 = por %p130, %p131
      %s134 = sadd.s32 %s133, 1
      %p137 = scmp.eq.s32.totalorder %s15, 1
      %p138 = scmp.ne.s32.totalorder %s133, %s135
      %p139 = scmp.eq.s32.totalorder %s15, 0
      %p140 = por %p138, %p139
      %p141 = scmp.ne.s32.totalorder %s133, %s135
      %p142 = scmp.eq.s32.totalorder %s20, 1
      %p143 = por %p141, %p142
      %p144 = scmp.ne.s32.totalorder %s135, %s136
      %p145 = scmp.eq.s32.totalorder %s20, 0
      %p146 = por %p144, %p145
      %p147 = scmp.ne.s32.totalorder %s135, %s136
      %p148 = scmp.eq.s32.totalorder %s21, 1
      %p149 = por %p147, %p148
      %p151 = scmp.ne.s32.totalorder %s136, %s150
      %p152 = scmp.eq.s32.totalorder %s21, 0
      %p153 = por %p151, %p152
      %s154 = ssub.s32 %s15, %s22
      %p155 = scmp.eq.s32.totalorder %s154, 0
      %s157 = sadd.s32 %s156, 1
      %s158 = scalar_select %p155, %s156, %s157
      %p161 = pneg %p155
      %p162 = scmp.eq.s32.totalorder %s15, 1
      %p163 = por %p161, %p162
      %p164 = scmp.ne.s32.totalorder %s156, %s159
      %p165 = scmp.eq.s32.totalorder %s15, 0
      %p166 = por %p164, %p165
      %p167 = scmp.ne.s32.totalorder %s156, %s159
      %p168 = scmp.eq.s32.totalorder %s20, 1
      %p169 = por %p167, %p168
      %p170 = scmp.ne.s32.totalorder %s159, %s160
      %p171 = scmp.eq.s32.totalorder %s20, 0
      %p172 = por %p170, %p171
      %p173 = scmp.ne.s32.totalorder %s159, %s160
      %p174 = scmp.eq.s32.totalorder %s21, 1
      %p175 = por %p173, %p174
      %p177 = scmp.ne.s32.totalorder %s160, %s176
      %p178 = scmp.eq.s32.totalorder %s21, 0
      %p179 = por %p177, %p178
      %p180 = scmp.le.s32.totalorder 1, %s15
      %p181 = scmp.lt.s32.totalorder %s15, 3
      %p182 = pnand %p180, %p181
      %p183 = pneg %p182
      // Predicated region
      $region9: #{top_attention_forward.1} parent=5 // pred_check
        _
      $region10: #{top_attention_forward.1} parent=5 // pred_check_branch
        %185 = sbr.rel (%p182) target = $region12
      $region11: #{top_attention_forward.1} parent=5 // pred_region
        %s186 = ssub.s32 %s15, 1
        // Predicated region
        $region13: #{top_attention_forward.1} parent=11 // pred_check
          %p187 = pneg %p62
        $region14: #{top_attention_forward.1} parent=11 // pred_check_branch
          %189 = sbr.rel (%p187) target = $region16
        $region15: #{top_attention_forward.1} parent=11 // pred_region
          _
        $region16: #{top_attention_forward.1} parent=11 // pred_fallthru
          _
        // Predicated region
        $region17: #{top_attention_forward.1} parent=11 // pred_check
          %p190 = pneg %p83
        $region18: #{top_attention_forward.1} parent=11 // pred_check_branch
          %192 = sbr.rel (%p190) target = $region20
        $region19: #{top_attention_forward.1} parent=11 // pred_region
          _
        $region20: #{top_attention_forward.1} parent=11 // pred_fallthru
          _
        // Predicated region
        $region21: #{top_attention_forward.1} parent=11 // pred_check
          %p193 = pneg %p104
        $region22: #{top_attention_forward.1} parent=11 // pred_check_branch
          %195 = sbr.rel (%p193) target = $region24
        $region23: #{top_attention_forward.1} parent=11 // pred_region
          _
        $region24: #{top_attention_forward.1} parent=11 // pred_fallthru
          _
        // Predicated region
        $region25: #{top_attention_forward.1} parent=11 // pred_check
          %p196 = pneg %p125
        $region26: #{top_attention_forward.1} parent=11 // pred_check_branch
          %198 = sbr.rel (%p196) target = $region28
        $region27: #{top_attention_forward.1} parent=11 // pred_region
          _
        $region28: #{top_attention_forward.1} parent=11 // pred_fallthru
          _
        // Predicated region
        $region29: #{top_attention_forward.1} parent=11 // pred_check
          %p199 = pneg %p146
        $region30: #{top_attention_forward.1} parent=11 // pred_check_branch
          %201 = sbr.rel (%p199) target = $region32
        $region31: #{top_attention_forward.1} parent=11 // pred_region
          _
        $region32: #{top_attention_forward.1} parent=11 // pred_fallthru
          _
      $region12: #{top_attention_forward.1} parent=5 // pred_fallthru
        _
      %p202 = scmp.lt.s32.totalorder %s15, 2
      // Predicated region
      $region33: #{top_attention_forward.1} parent=5 // pred_check
        %p203 = pneg %p202
      $region34: #{top_attention_forward.1} parent=5 // pred_check_branch
        %205 = sbr.rel (%p203) target = $region36
      $region35: #{top_attention_forward.1} parent=5 // pred_region
        // Predicated region
        $region37: #{top_attention_forward.1} parent=35 // pred_check
          %p206 = pneg %p35
        $region38: #{top_attention_forward.1} parent=35 // pred_check_branch
          %208 = sbr.rel (%p206) target = $region40
        $region39: #{top_attention_forward.1} parent=35 // pred_region
          %p209 = scmp.lt.s32.totalorder %s15, 1
          %s210 = scalar_select %p209, %s15, 1
          %s211 = smul.addr %s210, 52
          %s212 = smul.addr %s211, 8
          %s213 = scalar_lea.vmem %s0, %s212
        $region40: #{top_attention_forward.1} parent=35 // pred_fallthru
          _
      $region36: #{top_attention_forward.1} parent=5 // pred_fallthru
        _
      %p214 = scmp.le.s32.totalorder 1, %s15
      %p215 = scmp.lt.s32.totalorder %s15, 3
      %p216 = pnand %p214, %p215
      %p217 = pneg %p216
      // Predicated region
      $region41: #{top_attention_forward.1} parent=5 // pred_check
        _
      $region42: #{top_attention_forward.1} parent=5 // pred_check_branch
        %219 = sbr.rel (%p216) target = $region44
      $region43: #{top_attention_forward.1} parent=5 // pred_region
        %s220 = ssub.s32 %s15, 1
        %p221 = scmp.lt.s32.totalorder %s20, 1
        %s222 = scalar_select %p221, %s20, 1
        %s223 = smul.addr %s222, 52
        %s224 = smul.addr %s223, 8
        %s225 = scalar_lea.vmem %s0, %s224
        %p226 = pneg %p41
        %p227 = pneg %p38
        %p228 = pneg %p62
        %p229 = pneg %p59
        %p230 = pneg %p83
        %p231 = pneg %p80
        %p232 = pneg %p104
        %p233 = pneg %p101
        %p234 = pneg %p125
        %p235 = pneg %p122
        %p236 = pneg %p146
        %p237 = pneg %p143
        %p238 = pneg %p172
        %p239 = pneg %p169
        %s240 = sand.u32 %s159, 1
        %s241 = scalar_lea.sflag [#allocation5], %s240
        %s242 = sand.u32 %s159, 1
        %s243 = scalar_lea.vmem [#allocation4], %s242
        %p244 = scmp.lt.s32.totalorder %s20, 1
        %s245 = scalar_select %p244, %s20, 1
        %s246 = smul.addr %s245, 52
        %s247 = smul.addr %s246, 8
        %s248 = scalar_lea.vmem %s0, %s247
        %v249 = vld [vmem:[%s248] sm:$0xff]
        %v250 = vld [vmem:[%s248 + $0x8] sm:$0xff]
        %v251 = vld [vmem:[%s248 + $0x10] sm:$0xff]
        %v252 = vld [vmem:[%s248 + $0x18] sm:$0xff]
        %v253 = vld [vmem:[%s248 + $0x20] sm:$0xff]
        %v254 = vld [vmem:[%s248 + $0x28] sm:$0xff]
        %v255 = vld [vmem:[%s248 + $0x30] sm:$0xff]
        %v256 = vld [vmem:[%s248 + $0x38] sm:$0xff]
        %v257 = vld [vmem:[%s248 + $0x40] sm:$0xff]
        %v258 = vld [vmem:[%s248 + $0x48] sm:$0xff]
        %v259 = vld [vmem:[%s248 + $0x50] sm:$0xff]
        %v260 = vld [vmem:[%s248 + $0x58] sm:$0xff]
        %v261 = vld [vmem:[%s248 + $0x60] sm:$0xff]
        %v262 = vld [vmem:[%s248 + $0x68] sm:$0xff]
        %v263 = vld [vmem:[%s248 + $0x70] sm:$0xff]
        %v264 = vld [vmem:[%s248 + $0x78] sm:$0xff]
        %v265 = vld [vmem:[%s248 + $0x80] sm:$0xff]
        %v266 = vld [vmem:[%s248 + $0x88] sm:$0xff]
        %v267 = vld [vmem:[%s248 + $0x90] sm:$0xff]
        %v268 = vld [vmem:[%s248 + $0x98] sm:$0xff]
        %v269 = vld [vmem:[%s248 + $0xa0] sm:$0xff]
        %v270 = vld [vmem:[%s248 + $0xa8] sm:$0xff]
        %v271 = vld [vmem:[%s248 + $0xb0] sm:$0xff]
        %v272 = vld [vmem:[%s248 + $0xb8] sm:$0xff]
        %v273 = vld [vmem:[%s248 + $0xc0] sm:$0xff]
        %v274 = vld [vmem:[%s248 + $0xc8] sm:$0xff]
        %v275 = vld [vmem:[%s248 + $0xd0] sm:$0xff]
        %v276 = vld [vmem:[%s248 + $0xd8] sm:$0xff]
        %v277 = vld [vmem:[%s248 + $0xe0] sm:$0xff]
        %v278 = vld [vmem:[%s248 + $0xe8] sm:$0xff]
        %v279 = vld [vmem:[%s248 + $0xf0] sm:$0xff]
        %v280 = vld [vmem:[%s248 + $0xf8] sm:$0xff]
        %v281 = vld [vmem:[%s248 + $0x100] sm:$0xff]
        %v282 = vld [vmem:[%s248 + $0x108] sm:$0xff]
        %v283 = vld [vmem:[%s248 + $0x110] sm:$0xff]
        %v284 = vld [vmem:[%s248 + $0x118] sm:$0xff]
        %v285 = vld [vmem:[%s248 + $0x120] sm:$0xff]
        %v286 = vld [vmem:[%s248 + $0x128] sm:$0xff]
        %v287 = vld [vmem:[%s248 + $0x130] sm:$0xff]
        %v288 = vld [vmem:[%s248 + $0x138] sm:$0xff]
        %v289 = vld [vmem:[%s248 + $0x140] sm:$0xff]
        %v290 = vld [vmem:[%s248 + $0x148] sm:$0xff]
        %v291 = vld [vmem:[%s248 + $0x150] sm:$0xff]
        %v292 = vld [vmem:[%s248 + $0x158] sm:$0xff]
        %v293 = vld [vmem:[%s248 + $0x160] sm:$0xff]
        %v294 = vld [vmem:[%s248 + $0x168] sm:$0xff]
        %v295 = vld [vmem:[%s248 + $0x170] sm:$0xff]
        %v296 = vld [vmem:[%s248 + $0x178] sm:$0xff]
        %v297 = vld [vmem:[%s248 + $0x180] sm:$0xff]
        %v298 = vld [vmem:[%s248 + $0x188] sm:$0xff]
        %v299 = vld [vmem:[%s248 + $0x190] sm:$0xff]
        %v300 = vld [vmem:[%s248 + $0x198] sm:$0xff]
        %v301 = vld [vmem:[%s1] sm:$0xff]
        %v302 = vld [vmem:[%s1 + $0x8] sm:$0xff]
        %v303 = vld [vmem:[%s1 + $0x10] sm:$0xff]
        %v304 = vld [vmem:[%s1 + $0x18] sm:$0xff]
        %v305 = vld [vmem:[%s2] sm:$0xff]
        %v306 = vld [vmem:[%s2 + $0x8] sm:$0xff]
        %v307 = vld [vmem:[%s2 + $0x10] sm:$0xff]
        %v308 = vld [vmem:[%s2 + $0x18] sm:$0xff]
        %310 = vset.pattern.permute.xlu0 0
        %311 = vperm.xlu0 %310, %v305
        %v312 = vpop.permute.xlu0 %311
        %315 = vset.pattern.permute.xlu0 0
        %316 = vperm.xlu0 %315, %v306
        %v317 = vpop.permute.xlu0 %316
        %320 = vset.pattern.permute.xlu0 0
        %321 = vperm.xlu0 %320, %v307
        %v322 = vpop.permute.xlu0 %321
        %325 = vset.pattern.permute.xlu0 0
        %326 = vperm.xlu0 %325, %v308
        %v327 = vpop.permute.xlu0 %326
        %vm329 = vcmask 261120
        %v331 = vsel %vm329, %v301, 0
        %v334 = vsel %vm329, %v302, 0
        %v337 = vsel %vm329, %v303, 0
        %v340 = vsel %vm329, %v304, 0
        %342 = vmatprep.subr.mxu0 0.0
        %343 = vmatpush1.msra.mxu0 0.0
        %344 = vmatprep.subr.mxu0 0.0
        %345 = vmatpush1.msra.mxu0 0.0
        %346 = vmatprep.subr.mxu0 0.0
        %347 = vmatpush1.msra.mxu0 0.0
        %348 = vmatprep.subr.mxu0 0.0
        %349 = vmatpush1.msra.mxu0 0.0
        %350 = vmatprep.subr.mxu0 0.0
        %351 = vmatpush1.msra.mxu0 0.0
        %352 = vmatprep.subr.mxu0 0.0
        %353 = vmatpush1.msra.mxu0 0.0
        %354 = vmatprep.subr.mxu0 0.0
        %355 = vmatpush1.msra.mxu0 0.0
        %356 = vmatprep.subr.mxu0 0.0
        %357 = vmatpush1.msra.mxu0 0.0
        %358 = vmatprep.subr.mxu0 0.0
        %359 = vmatpush1.msra.mxu0 0.0
        %360 = vmatprep.subr.mxu0 0.0
        %361 = vmatpush1.msra.mxu0 0.0
        %362 = vmatprep.subr.mxu0 0.0
        %363 = vmatpush1.msra.mxu0 0.0
        %364 = vmatprep.subr.mxu0 0.0
        %365 = vmatpush1.msra.mxu0 0.0
        %366 = vmatprep.subr.mxu0 %v289
        %367 = vmatpush1.msra.mxu0 %v288
        %368 = vmatprep.subr.mxu0 %v276
        %369 = vmatpush1.msra.mxu0 %v275
        %370 = vmatprep.subr.mxu0 %v263
        %371 = vmatpush1.msra.mxu0 %v262
        %372 = vmatprep.subr.mxu0 %v250
        %373 = vmatpush1.msra.mxu0 %v249
        %374 = vmatprep.subr.mxu0 0.0
        %375 = vmatpush2.msra.mxu0 0.0
        %376 = vmatprep.subr.mxu0 0.0
        %377 = vmatpush2.msra.mxu0 0.0
        %378 = vmatprep.subr.mxu0 0.0
        %379 = vmatpush2.msra.mxu0 0.0
        %380 = vmatprep.subr.mxu0 0.0
        %381 = vmatpush2.msra.mxu0 0.0
        %382 = vmatprep.subr.mxu0 0.0
        %383 = vmatpush2.msra.mxu0 0.0
        %384 = vmatprep.subr.mxu0 0.0
        %385 = vmatpush2.msra.mxu0 0.0
        %386 = vmatprep.subr.mxu0 0.0
        %387 = vmatpush2.msra.mxu0 0.0
        %388 = vmatprep.subr.mxu0 0.0
        %389 = vmatpush2.msra.mxu0 0.0
        %390 = vmatprep.subr.mxu0 0.0
        %391 = vmatpush2.msra.mxu0 0.0
        %392 = vmatprep.subr.mxu0 0.0
        %393 = vmatpush2.msra.mxu0 0.0
        %394 = vmatprep.subr.mxu0 0.0
        %395 = vmatpush2.msra.mxu0 0.0
        %396 = vmatprep.subr.mxu0 0.0
        %397 = vmatpush2.msra.mxu0 0.0
        %398 = vmatprep.subr.mxu0 0.0
        %399 = vmatpush2.msra.mxu0 0.0
        %400 = vmatprep.subr.mxu0 0.0
        %401 = vmatpush2.msra.mxu0 0.0
        %402 = vmatprep.subr.mxu0 0.0
        %403 = vmatpush2.msra.mxu0 0.0
        %404 = vmatprep.subr.mxu0 0.0
        %405 = vmatpush2.msra.mxu0 0.0
        %406 = vmatprep.mubr.f32.mxu0 0.0
        %407 = vmatmul.mubr.f32.gmra.mxu0 %v331
        %v408 = vpop.f32.mrf.mxu0
        %v409 = vadd.f32 %v312, %v408
        %v410 = vpop.f32.mrf.mxu0
        %v411 = vadd.f32 %v312, %v410
        %412 = vmatprep.mubr.f32.mxu0 0.0
        %413 = vmatmul.mubr.f32.gmra.mxu0 %v334
        %v414 = vpop.f32.mrf.mxu0
        %v415 = vadd.f32 %v317, %v414
        %v416 = vpop.f32.mrf.mxu0
        %v417 = vadd.f32 %v317, %v416
        %418 = vmatprep.mubr.f32.mxu0 0.0
        %419 = vmatmul.mubr.f32.gmra.mxu0 %v337
        %v420 = vpop.f32.mrf.mxu0
        %v421 = vadd.f32 %v322, %v420
        %v422 = vpop.f32.mrf.mxu0
        %v423 = vadd.f32 %v322, %v422
        %424 = vmatprep.mubr.f32.mxu0 0.0
        %425 = vmatmul.mubr.f32.gmra.mxu0 %v340
        %v426 = vpop.f32.mrf.mxu0
        %v427 = vadd.f32 %v327, %v426
        %v428 = vpop.f32.mrf.mxu0
        %v429 = vadd.f32 %v327, %v428
        %430 = vdwg.mxu0
        %431 = vmatprep.subr.mxu0 0.0
        %432 = vmatpush1.msra.mxu0 0.0
        %433 = vmatprep.subr.mxu0 0.0
        %434 = vmatpush1.msra.mxu0 0.0
        %435 = vmatprep.subr.mxu0 0.0
        %436 = vmatpush1.msra.mxu0 0.0
        %437 = vmatprep.subr.mxu0 0.0
        %438 = vmatpush1.msra.mxu0 0.0
        %439 = vmatprep.subr.mxu0 0.0
        %440 = vmatpush1.msra.mxu0 0.0
        %441 = vmatprep.subr.mxu0 0.0
        %442 = vmatpush1.msra.mxu0 0.0
        %443 = vmatprep.subr.mxu0 0.0
        %444 = vmatpush1.msra.mxu0 0.0
        %445 = vmatprep.subr.mxu0 0.0
        %446 = vmatpush1.msra.mxu0 0.0
        %447 = vmatprep.subr.mxu0 0.0
        %448 = vmatpush1.msra.mxu0 0.0
        %449 = vmatprep.subr.mxu0 0.0
        %450 = vmatpush1.msra.mxu0 0.0
        %451 = vmatprep.subr.mxu0 0.0
        %452 = vmatpush1.msra.mxu0 0.0
        %453 = vmatprep.subr.mxu0 0.0
        %454 = vmatpush1.msra.mxu0 0.0
        %455 = vmatprep.subr.mxu0 %v291
        %456 = vmatpush1.msra.mxu0 %v290
        %457 = vmatprep.subr.mxu0 %v278
        %458 = vmatpush1.msra.mxu0 %v277
        %459 = vmatprep.subr.mxu0 %v265
        %460 = vmatpush1.msra.mxu0 %v264
        %461 = vmatprep.subr.mxu0 %v252
        %462 = vmatpush1.msra.mxu0 %v251
        %463 = vmatprep.subr.mxu0 0.0
        %464 = vmatpush2.msra.mxu0 0.0
        %465 = vmatprep.subr.mxu0 0.0
        %466 = vmatpush2.msra.mxu0 0.0
        %467 = vmatprep.subr.mxu0 0.0
        %468 = vmatpush2.msra.mxu0 0.0
        %469 = vmatprep.subr.mxu0 0.0
        %470 = vmatpush2.msra.mxu0 0.0
        %471 = vmatprep.subr.mxu0 0.0
        %472 = vmatpush2.msra.mxu0 0.0
        %473 = vmatprep.subr.mxu0 0.0
        %474 = vmatpush2.msra.mxu0 0.0
        %475 = vmatprep.subr.mxu0 0.0
        %476 = vmatpush2.msra.mxu0 0.0
        %477 = vmatprep.subr.mxu0 0.0
        %478 = vmatpush2.msra.mxu0 0.0
        %479 = vmatprep.subr.mxu0 0.0
        %480 = vmatpush2.msra.mxu0 0.0
        %481 = vmatprep.subr.mxu0 0.0
        %482 = vmatpush2.msra.mxu0 0.0
        %483 = vmatprep.subr.mxu0 0.0
        %484 = vmatpush2.msra.mxu0 0.0
        %485 = vmatprep.subr.mxu0 0.0
        %486 = vmatpush2.msra.mxu0 0.0
        %487 = vmatprep.subr.mxu0 0.0
        %488 = vmatpush2.msra.mxu0 0.0
        %489 = vmatprep.subr.mxu0 0.0
        %490 = vmatpush2.msra.mxu0 0.0
        %491 = vmatprep.subr.mxu0 0.0
        %492 = vmatpush2.msra.mxu0 0.0
        %493 = vmatprep.subr.mxu0 0.0
        %494 = vmatpush2.msra.mxu0 0.0
        %495 = vmatprep.mubr.f32.mxu0 0.0
        %496 = vmatmul.mubr.f32.gmra.mxu0 %v331
        %v497 = vpop.f32.mrf.mxu0
        %v498 = vadd.f32 %v312, %v497
        %v499 = vpop.f32.mrf.mxu0
        %v500 = vadd.f32 %v312, %v499
        %501 = vmatprep.mubr.f32.mxu0 0.0
        %502 = vmatmul.mubr.f32.gmra.mxu0 %v334
        %v503 = vpop.f32.mrf.mxu0
        %v504 = vadd.f32 %v317, %v503
        %v505 = vpop.f32.mrf.mxu0
        %v506 = vadd.f32 %v317, %v505
        %507 = vmatprep.mubr.f32.mxu0 0.0
        %508 = vmatmul.mubr.f32.gmra.mxu0 %v337
        %v509 = vpop.f32.mrf.mxu0
        %v510 = vadd.f32 %v322, %v509
        %v511 = vpop.f32.mrf.mxu0
        %v512 = vadd.f32 %v322, %v511
        %513 = vmatprep.mubr.f32.mxu0 0.0
        %514 = vmatmul.mubr.f32.gmra.mxu0 %v340
        %v515 = vpop.f32.mrf.mxu0
        %v516 = vadd.f32 %v327, %v515
        %v517 = vpop.f32.mrf.mxu0
        %v518 = vadd.f32 %v327, %v517
        %519 = vdwg.mxu0
        %520 = vmatprep.subr.mxu0 0.0
        %521 = vmatpush1.msra.mxu0 0.0
        %522 = vmatprep.subr.mxu0 0.0
        %523 = vmatpush1.msra.mxu0 0.0
        %524 = vmatprep.subr.mxu0 0.0
        %525 = vmatpush1.msra.mxu0 0.0
        %526 = vmatprep.subr.mxu0 0.0
        %527 = vmatpush1.msra.mxu0 0.0
        %528 = vmatprep.subr.mxu0 0.0
        %529 = vmatpush1.msra.mxu0 0.0
        %530 = vmatprep.subr.mxu0 0.0
        %531 = vmatpush1.msra.mxu0 0.0
        %532 = vmatprep.subr.mxu0 0.0
        %533 = vmatpush1.msra.mxu0 0.0
        %534 = vmatprep.subr.mxu0 0.0
        %535 = vmatpush1.msra.mxu0 0.0
        %536 = vmatprep.subr.mxu0 0.0
        %537 = vmatpush1.msra.mxu0 0.0
        %538 = vmatprep.subr.mxu0 0.0
        %539 = vmatpush1.msra.mxu0 0.0
        %540 = vmatprep.subr.mxu0 0.0
        %541 = vmatpush1.msra.mxu0 0.0
        %542 = vmatprep.subr.mxu0 0.0
        %543 = vmatpush1.msra.mxu0 0.0
        %544 = vmatprep.subr.mxu0 %v293
        %545 = vmatpush1.msra.mxu0 %v292
        %546 = vmatprep.subr.mxu0 %v280
        %547 = vmatpush1.msra.mxu0 %v279
        %548 = vmatprep.subr.mxu0 %v267
        %549 = vmatpush1.msra.mxu0 %v266
        %550 = vmatprep.subr.mxu0 %v254
        %551 = vmatpush1.msra.mxu0 %v253
        %552 = vmatprep.subr.mxu0 0.0
        %553 = vmatpush2.msra.mxu0 0.0
        %554 = vmatprep.subr.mxu0 0.0
        %555 = vmatpush2.msra.mxu0 0.0
        %556 = vmatprep.subr.mxu0 0.0
        %557 = vmatpush2.msra.mxu0 0.0
        %558 = vmatprep.subr.mxu0 0.0
        %559 = vmatpush2.msra.mxu0 0.0
        %560 = vmatprep.subr.mxu0 0.0
        %561 = vmatpush2.msra.mxu0 0.0
        %562 = vmatprep.subr.mxu0 0.0
        %563 = vmatpush2.msra.mxu0 0.0
        %564 = vmatprep.subr.mxu0 0.0
        %565 = vmatpush2.msra.mxu0 0.0
        %566 = vmatprep.subr.mxu0 0.0
        %567 = vmatpush2.msra.mxu0 0.0
        %568 = vmatprep.subr.mxu0 0.0
        %569 = vmatpush2.msra.mxu0 0.0
        %570 = vmatprep.subr.mxu0 0.0
        %571 = vmatpush2.msra.mxu0 0.0
        %572 = vmatprep.subr.mxu0 0.0
        %573 = vmatpush2.msra.mxu0 0.0
        %574 = vmatprep.subr.mxu0 0.0
        %575 = vmatpush2.msra.mxu0 0.0
        %576 = vmatprep.subr.mxu0 0.0
        %577 = vmatpush2.msra.mxu0 0.0
        %578 = vmatprep.subr.mxu0 0.0
        %579 = vmatpush2.msra.mxu0 0.0
        %580 = vmatprep.subr.mxu0 0.0
        %581 = vmatpush2.msra.mxu0 0.0
        %582 = vmatprep.subr.mxu0 0.0
        %583 = vmatpush2.msra.mxu0 0.0
        %584 = vmatprep.mubr.f32.mxu0 0.0
        %585 = vmatmul.mubr.f32.gmra.mxu0 %v331
        %v586 = vpop.f32.mrf.mxu0
        %v587 = vadd.f32 %v312, %v586
        %v588 = vpop.f32.mrf.mxu0
        %v589 = vadd.f32 %v312, %v588
        %590 = vmatprep.mubr.f32.mxu0 0.0
        %591 = vmatmul.mubr.f32.gmra.mxu0 %v334
        %v592 = vpop.f32.mrf.mxu0
        %v593 = vadd.f32 %v317, %v592
        %v594 = vpop.f32.mrf.mxu0
        %v595 = vadd.f32 %v317, %v594
        %596 = vmatprep.mubr.f32.mxu0 0.0
        %597 = vmatmul.mubr.f32.gmra.mxu0 %v337
        %v598 = vpop.f32.mrf.mxu0
        %v599 = vadd.f32 %v322, %v598
        %v600 = vpop.f32.mrf.mxu0
        %v601 = vadd.f32 %v322, %v600
        %602 = vmatprep.mubr.f32.mxu0 0.0
        %603 = vmatmul.mubr.f32.gmra.mxu0 %v340
        %v604 = vpop.f32.mrf.mxu0
        %v605 = vadd.f32 %v327, %v604
        %v606 = vpop.f32.mrf.mxu0
        %v607 = vadd.f32 %v327, %v606
        %608 = vdwg.mxu0
        %609 = vmatprep.subr.mxu0 0.0
        %610 = vmatpush1.msra.mxu0 0.0
        %611 = vmatprep.subr.mxu0 0.0
        %612 = vmatpush1.msra.mxu0 0.0
        %613 = vmatprep.subr.mxu0 0.0
        %614 = vmatpush1.msra.mxu0 0.0
        %615 = vmatprep.subr.mxu0 0.0
        %616 = vmatpush1.msra.mxu0 0.0
        %617 = vmatprep.subr.mxu0 0.0
        %618 = vmatpush1.msra.mxu0 0.0
        %619 = vmatprep.subr.mxu0 0.0
        %620 = vmatpush1.msra.mxu0 0.0
        %621 = vmatprep.subr.mxu0 0.0
        %622 = vmatpush1.msra.mxu0 0.0
        %623 = vmatprep.subr.mxu0 0.0
        %624 = vmatpush1.msra.mxu0 0.0
        %625 = vmatprep.subr.mxu0 0.0
        %626 = vmatpush1.msra.mxu0 0.0
        %627 = vmatprep.subr.mxu0 0.0
        %628 = vmatpush1.msra.mxu0 0.0
        %629 = vmatprep.subr.mxu0 0.0
        %630 = vmatpush1.msra.mxu0 0.0
        %631 = vmatprep.subr.mxu0 0.0
        %632 = vmatpush1.msra.mxu0 0.0
        %633 = vmatprep.subr.mxu0 %v295
        %634 = vmatpush1.msra.mxu0 %v294
        %635 = vmatprep.subr.mxu0 %v282
        %636 = vmatpush1.msra.mxu0 %v281
        %637 = vmatprep.subr.mxu0 %v269
        %638 = vmatpush1.msra.mxu0 %v268
        %639 = vmatprep.subr.mxu0 %v256
        %640 = vmatpush1.msra.mxu0 %v255
        %641 = vmatprep.subr.mxu0 0.0
        %642 = vmatpush2.msra.mxu0 0.0
        %643 = vmatprep.subr.mxu0 0.0
        %644 = vmatpush2.msra.mxu0 0.0
        %645 = vmatprep.subr.mxu0 0.0
        %646 = vmatpush2.msra.mxu0 0.0
        %647 = vmatprep.subr.mxu0 0.0
        %648 = vmatpush2.msra.mxu0 0.0
        %649 = vmatprep.subr.mxu0 0.0
        %650 = vmatpush2.msra.mxu0 0.0
        %651 = vmatprep.subr.mxu0 0.0
        %652 = vmatpush2.msra.mxu0 0.0
        %653 = vmatprep.subr.mxu0 0.0
        %654 = vmatpush2.msra.mxu0 0.0
        %655 = vmatprep.subr.mxu0 0.0
        %656 = vmatpush2.msra.mxu0 0.0
        %657 = vmatprep.subr.mxu0 0.0
        %658 = vmatpush2.msra.mxu0 0.0
        %659 = vmatprep.subr.mxu0 0.0
        %660 = vmatpush2.msra.mxu0 0.0
        %661 = vmatprep.subr.mxu0 0.0
        %662 = vmatpush2.msra.mxu0 0.0
        %663 = vmatprep.subr.mxu0 0.0
        %664 = vmatpush2.msra.mxu0 0.0
        %665 = vmatprep.subr.mxu0 0.0
        %666 = vmatpush2.msra.mxu0 0.0
        %667 = vmatprep.subr.mxu0 0.0
        %668 = vmatpush2.msra.mxu0 0.0
        %669 = vmatprep.subr.mxu0 0.0
        %670 = vmatpush2.msra.mxu0 0.0
        %671 = vmatprep.subr.mxu0 0.0
        %672 = vmatpush2.msra.mxu0 0.0
        %673 = vmatprep.mubr.f32.mxu0 0.0
        %674 = vmatmul.mubr.f32.gmra.mxu0 %v331
        %v675 = vpop.f32.mrf.mxu0
        %v676 = vadd.f32 %v312, %v675
        %v677 = vpop.f32.mrf.mxu0
        %v678 = vadd.f32 %v312, %v677
        %679 = vmatprep.mubr.f32.mxu0 0.0
        %680 = vmatmul.mubr.f32.gmra.mxu0 %v334
        %v681 = vpop.f32.mrf.mxu0
        %v682 = vadd.f32 %v317, %v681
        %v683 = vpop.f32.mrf.mxu0
        %v684 = vadd.f32 %v317, %v683
        %685 = vmatprep.mubr.f32.mxu0 0.0
        %686 = vmatmul.mubr.f32.gmra.mxu0 %v337
        %v687 = vpop.f32.mrf.mxu0
        %v688 = vadd.f32 %v322, %v687
        %v689 = vpop.f32.mrf.mxu0
        %v690 = vadd.f32 %v322, %v689
        %691 = vmatprep.mubr.f32.mxu0 0.0
        %692 = vmatmul.mubr.f32.gmra.mxu0 %v340
        %v693 = vpop.f32.mrf.mxu0
        %v694 = vadd.f32 %v327, %v693
        %v695 = vpop.f32.mrf.mxu0
        %v696 = vadd.f32 %v327, %v695
        %697 = vdwg.mxu0
        %698 = vmatprep.subr.mxu0 0.0
        %699 = vmatpush1.msra.mxu0 0.0
        %700 = vmatprep.subr.mxu0 0.0
        %701 = vmatpush1.msra.mxu0 0.0
        %702 = vmatprep.subr.mxu0 0.0
        %703 = vmatpush1.msra.mxu0 0.0
        %704 = vmatprep.subr.mxu0 0.0
        %705 = vmatpush1.msra.mxu0 0.0
        %706 = vmatprep.subr.mxu0 0.0
        %707 = vmatpush1.msra.mxu0 0.0
        %708 = vmatprep.subr.mxu0 0.0
        %709 = vmatpush1.msra.mxu0 0.0
        %710 = vmatprep.subr.mxu0 0.0
        %711 = vmatpush1.msra.mxu0 0.0
        %712 = vmatprep.subr.mxu0 0.0
        %713 = vmatpush1.msra.mxu0 0.0
        %714 = vmatprep.subr.mxu0 0.0
        %715 = vmatpush1.msra.mxu0 0.0
        %716 = vmatprep.subr.mxu0 0.0
        %717 = vmatpush1.msra.mxu0 0.0
        %718 = vmatprep.subr.mxu0 0.0
        %719 = vmatpush1.msra.mxu0 0.0
        %720 = vmatprep.subr.mxu0 0.0
        %721 = vmatpush1.msra.mxu0 0.0
        %722 = vmatprep.subr.mxu0 %v297
        %723 = vmatpush1.msra.mxu0 %v296
        %724 = vmatprep.subr.mxu0 %v284
        %725 = vmatpush1.msra.mxu0 %v283
        %726 = vmatprep.subr.mxu0 %v271
        %727 = vmatpush1.msra.mxu0 %v270
        %728 = vmatprep.subr.mxu0 %v258
        %729 = vmatpush1.msra.mxu0 %v257
        %730 = vmatprep.subr.mxu0 0.0
        %731 = vmatpush2.msra.mxu0 0.0
        %732 = vmatprep.subr.mxu0 0.0
        %733 = vmatpush2.msra.mxu0 0.0
        %734 = vmatprep.subr.mxu0 0.0
        %735 = vmatpush2.msra.mxu0 0.0
        %736 = vmatprep.subr.mxu0 0.0
        %737 = vmatpush2.msra.mxu0 0.0
        %738 = vmatprep.subr.mxu0 0.0
        %739 = vmatpush2.msra.mxu0 0.0
        %740 = vmatprep.subr.mxu0 0.0
        %741 = vmatpush2.msra.mxu0 0.0
        %742 = vmatprep.subr.mxu0 0.0
        %743 = vmatpush2.msra.mxu0 0.0
        %744 = vmatprep.subr.mxu0 0.0
        %745 = vmatpush2.msra.mxu0 0.0
        %746 = vmatprep.subr.mxu0 0.0
        %747 = vmatpush2.msra.mxu0 0.0
        %748 = vmatprep.subr.mxu0 0.0
        %749 = vmatpush2.msra.mxu0 0.0
        %750 = vmatprep.subr.mxu0 0.0
        %751 = vmatpush2.msra.mxu0 0.0
        %752 = vmatprep.subr.mxu0 0.0
        %753 = vmatpush2.msra.mxu0 0.0
        %754 = vmatprep.subr.mxu0 0.0
        %755 = vmatpush2.msra.mxu0 0.0
        %756 = vmatprep.subr.mxu0 0.0
        %757 = vmatpush2.msra.mxu0 0.0
        %758 = vmatprep.subr.mxu0 0.0
        %759 = vmatpush2.msra.mxu0 0.0
        %760 = vmatprep.subr.mxu0 0.0
        %761 = vmatpush2.msra.mxu0 0.0
        %762 = vmatprep.mubr.f32.mxu0 0.0
        %763 = vmatmul.mubr.f32.gmra.mxu0 %v331
        %v764 = vpop.f32.mrf.mxu0
        %v765 = vadd.f32 %v312, %v764
        %v766 = vpop.f32.mrf.mxu0
        %v767 = vadd.f32 %v312, %v766
        %768 = vmatprep.mubr.f32.mxu0 0.0
        %769 = vmatmul.mubr.f32.gmra.mxu0 %v334
        %v770 = vpop.f32.mrf.mxu0
        %v771 = vadd.f32 %v317, %v770
        %v772 = vpop.f32.mrf.mxu0
        %v773 = vadd.f32 %v317, %v772
        %774 = vmatprep.mubr.f32.mxu0 0.0
        %775 = vmatmul.mubr.f32.gmra.mxu0 %v337
        %v776 = vpop.f32.mrf.mxu0
        %v777 = vadd.f32 %v322, %v776
        %v778 = vpop.f32.mrf.mxu0
        %v779 = vadd.f32 %v322, %v778
        %780 = vmatprep.mubr.f32.mxu0 0.0
        %781 = vmatmul.mubr.f32.gmra.mxu0 %v340
        %v782 = vpop.f32.mrf.mxu0
        %v783 = vadd.f32 %v327, %v782
        %v784 = vpop.f32.mrf.mxu0
        %v785 = vadd.f32 %v327, %v784
        %786 = vdwg.mxu0
        %787 = vmatprep.subr.mxu0 0.0
        %788 = vmatpush1.msra.mxu0 0.0
        %789 = vmatprep.subr.mxu0 0.0
        %790 = vmatpush1.msra.mxu0 0.0
        %791 = vmatprep.subr.mxu0 0.0
        %792 = vmatpush1.msra.mxu0 0.0
        %793 = vmatprep.subr.mxu0 0.0
        %794 = vmatpush1.msra.mxu0 0.0
        %795 = vmatprep.subr.mxu0 0.0
        %796 = vmatpush1.msra.mxu0 0.0
        %797 = vmatprep.subr.mxu0 0.0
        %798 = vmatpush1.msra.mxu0 0.0
        %799 = vmatprep.subr.mxu0 0.0
        %800 = vmatpush1.msra.mxu0 0.0
        %801 = vmatprep.subr.mxu0 0.0
        %802 = vmatpush1.msra.mxu0 0.0
        %803 = vmatprep.subr.mxu0 0.0
        %804 = vmatpush1.msra.mxu0 0.0
        %805 = vmatprep.subr.mxu0 0.0
        %806 = vmatpush1.msra.mxu0 0.0
        %807 = vmatprep.subr.mxu0 0.0
        %808 = vmatpush1.msra.mxu0 0.0
        %809 = vmatprep.subr.mxu0 0.0
        %810 = vmatpush1.msra.mxu0 0.0
        %811 = vmatprep.subr.mxu0 %v299
        %812 = vmatpush1.msra.mxu0 %v298
        %813 = vmatprep.subr.mxu0 %v286
        %814 = vmatpush1.msra.mxu0 %v285
        %815 = vmatprep.subr.mxu0 %v273
        %816 = vmatpush1.msra.mxu0 %v272
        %817 = vmatprep.subr.mxu0 %v260
        %818 = vmatpush1.msra.mxu0 %v259
        %819 = vmatprep.subr.mxu0 0.0
        %820 = vmatpush2.msra.mxu0 0.0
        %821 = vmatprep.subr.mxu0 0.0
        %822 = vmatpush2.msra.mxu0 0.0
        %823 = vmatprep.subr.mxu0 0.0
        %824 = vmatpush2.msra.mxu0 0.0
        %825 = vmatprep.subr.mxu0 0.0
        %826 = vmatpush2.msra.mxu0 0.0
        %827 = vmatprep.subr.mxu0 0.0
        %828 = vmatpush2.msra.mxu0 0.0
        %829 = vmatprep.subr.mxu0 0.0
        %830 = vmatpush2.msra.mxu0 0.0
        %831 = vmatprep.subr.mxu0 0.0
        %832 = vmatpush2.msra.mxu0 0.0
        %833 = vmatprep.subr.mxu0 0.0
        %834 = vmatpush2.msra.mxu0 0.0
        %835 = vmatprep.subr.mxu0 0.0
        %836 = vmatpush2.msra.mxu0 0.0
        %837 = vmatprep.subr.mxu0 0.0
        %838 = vmatpush2.msra.mxu0 0.0
        %839 = vmatprep.subr.mxu0 0.0
        %840 = vmatpush2.msra.mxu0 0.0
        %841 = vmatprep.subr.mxu0 0.0
        %842 = vmatpush2.msra.mxu0 0.0
        %843 = vmatprep.subr.mxu0 0.0
        %844 = vmatpush2.msra.mxu0 0.0
        %845 = vmatprep.subr.mxu0 0.0
        %846 = vmatpush2.msra.mxu0 0.0
        %847 = vmatprep.subr.mxu0 0.0
        %848 = vmatpush2.msra.mxu0 0.0
        %849 = vmatprep.subr.mxu0 0.0
        %850 = vmatpush2.msra.mxu0 0.0
        %851 = vmatprep.mubr.f32.mxu0 0.0
        %852 = vmatmul.mubr.f32.gmra.mxu0 %v331
        %v853 = vpop.f32.mrf.mxu0
        %v854 = vadd.f32 %v312, %v853
        %v855 = vpop.f32.mrf.mxu0
        %v856 = vadd.f32 %v312, %v855
        %857 = vmatprep.mubr.f32.mxu0 0.0
        %858 = vmatmul.mubr.f32.gmra.mxu0 %v334
        %v859 = vpop.f32.mrf.mxu0
        %v860 = vadd.f32 %v317, %v859
        %v861 = vpop.f32.mrf.mxu0
        %v862 = vadd.f32 %v317, %v861
        %863 = vmatprep.mubr.f32.mxu0 0.0
        %864 = vmatmul.mubr.f32.gmra.mxu0 %v337
        %v865 = vpop.f32.mrf.mxu0
        %v866 = vadd.f32 %v322, %v865
        %v867 = vpop.f32.mrf.mxu0
        %v868 = vadd.f32 %v322, %v867
        %869 = vmatprep.mubr.f32.mxu0 0.0
        %870 = vmatmul.mubr.f32.gmra.mxu0 %v340
        %v871 = vpop.f32.mrf.mxu0
        %v872 = vadd.f32 %v327, %v871
        %v873 = vpop.f32.mrf.mxu0
        %v874 = vadd.f32 %v327, %v873
        %875 = vdwg.mxu0
        %876 = vmatprep.subr.mxu0 0.0
        %877 = vmatpush1.msra.mxu0 0.0
        %878 = vmatprep.subr.mxu0 0.0
        %879 = vmatpush1.msra.mxu0 0.0
        %880 = vmatprep.subr.mxu0 0.0
        %881 = vmatpush1.msra.mxu0 0.0
        %882 = vmatprep.subr.mxu0 0.0
        %883 = vmatpush1.msra.mxu0 0.0
        %884 = vmatprep.subr.mxu0 0.0
        %885 = vmatpush1.msra.mxu0 0.0
        %886 = vmatprep.subr.mxu0 0.0
        %887 = vmatpush1.msra.mxu0 0.0
        %888 = vmatprep.subr.mxu0 0.0
        %889 = vmatpush1.msra.mxu0 0.0
        %890 = vmatprep.subr.mxu0 0.0
        %891 = vmatpush1.msra.mxu0 0.0
        %892 = vmatprep.subr.mxu0 0.0
        %893 = vmatpush1.msra.mxu0 0.0
        %894 = vmatprep.subr.mxu0 0.0
        %895 = vmatpush1.msra.mxu0 0.0
        %896 = vmatprep.subr.mxu0 0.0
        %897 = vmatpush1.msra.mxu0 0.0
        %898 = vmatprep.subr.mxu0 0.0
        %899 = vmatpush1.msra.mxu0 0.0
        %900 = vmatprep.subr.mxu0 0.0
        %901 = vmatpush1.msra.mxu0 %v300
        %902 = vmatprep.subr.mxu0 0.0
        %903 = vmatpush1.msra.mxu0 %v287
        %904 = vmatprep.subr.mxu0 0.0
        %905 = vmatpush1.msra.mxu0 %v274
        %906 = vmatprep.subr.mxu0 0.0
        %907 = vmatpush1.msra.mxu0 %v261
        %908 = vmatprep.subr.mxu0 0.0
        %909 = vmatpush2.msra.mxu0 0.0
        %910 = vmatprep.subr.mxu0 0.0
        %911 = vmatpush2.msra.mxu0 0.0
        %912 = vmatprep.subr.mxu0 0.0
        %913 = vmatpush2.msra.mxu0 0.0
        %914 = vmatprep.subr.mxu0 0.0
        %915 = vmatpush2.msra.mxu0 0.0
        %916 = vmatprep.subr.mxu0 0.0
        %917 = vmatpush2.msra.mxu0 0.0
        %918 = vmatprep.subr.mxu0 0.0
        %919 = vmatpush2.msra.mxu0 0.0
        %920 = vmatprep.subr.mxu0 0.0
        %921 = vmatpush2.msra.mxu0 0.0
        %922 = vmatprep.subr.mxu0 0.0
        %923 = vmatpush2.msra.mxu0 0.0
        %924 = vmatprep.subr.mxu0 0.0
        %925 = vmatpush2.msra.mxu0 0.0
        %926 = vmatprep.subr.mxu0 0.0
        %927 = vmatpush2.msra.mxu0 0.0
        %928 = vmatprep.subr.mxu0 0.0
        %929 = vmatpush2.msra.mxu0 0.0
        %930 = vmatprep.subr.mxu0 0.0
        %931 = vmatpush2.msra.mxu0 0.0
        %932 = vmatprep.subr.mxu0 0.0
        %933 = vmatpush2.msra.mxu0 0.0
        %934 = vmatprep.subr.mxu0 0.0
        %935 = vmatpush2.msra.mxu0 0.0
        %936 = vmatprep.subr.mxu0 0.0
        %937 = vmatpush2.msra.mxu0 0.0
        %938 = vmatprep.subr.mxu0 0.0
        %939 = vmatpush2.msra.mxu0 0.0
        %940 = vmatprep.mubr.f32.mxu0 0.0
        %941 = vmatmul.mubr.f32.gmra.mxu0 %v331
        %v942 = vpop.f32.mrf.mxu0
        %v943 = vadd.f32 %v312, %v942
        %v944 = vpop.f32.mrf.mxu0
        %945 = vmatprep.mubr.f32.mxu0 0.0
        %946 = vmatmul.mubr.f32.gmra.mxu0 %v334
        %v947 = vpop.f32.mrf.mxu0
        %v948 = vadd.f32 %v317, %v947
        %v949 = vpop.f32.mrf.mxu0
        %950 = vmatprep.mubr.f32.mxu0 0.0
        %951 = vmatmul.mubr.f32.gmra.mxu0 %v337
        %v952 = vpop.f32.mrf.mxu0
        %v953 = vadd.f32 %v322, %v952
        %v954 = vpop.f32.mrf.mxu0
        %955 = vmatprep.mubr.f32.mxu0 0.0
        %956 = vmatmul.mubr.f32.gmra.mxu0 %v340
        %v957 = vpop.f32.mrf.mxu0
        %v958 = vadd.f32 %v327, %v957
        %v959 = vpop.f32.mrf.mxu0
        %960 = vdwg.mxu0
        %v961 = vtanh.pop %v409
        %v962 = vtanh.pop %v411
        %v963 = vtanh.pop %v498
        %v964 = vtanh.pop %v500
        %v965 = vtanh.pop %v587
        %v966 = vtanh.pop %v589
        %v967 = vtanh.pop %v676
        %v968 = vtanh.pop %v678
        %v969 = vtanh.pop %v765
        %v970 = vtanh.pop %v767
        %v971 = vtanh.pop %v854
        %v972 = vtanh.pop %v856
        %v973 = vtanh.pop %v943
        %v974 = vtanh.pop %v415
        %v975 = vtanh.pop %v417
        %v976 = vtanh.pop %v504
        %v977 = vtanh.pop %v506
        %v978 = vtanh.pop %v593
        %v979 = vtanh.pop %v595
        %v980 = vtanh.pop %v682
        %v981 = vtanh.pop %v684
        %v982 = vtanh.pop %v771
        %v983 = vtanh.pop %v773
        %v984 = vtanh.pop %v860
        %v985 = vtanh.pop %v862
        %v986 = vtanh.pop %v948
        %v987 = vtanh.pop %v421
        %v988 = vtanh.pop %v423
        %v989 = vtanh.pop %v510
        %v990 = vtanh.pop %v512
        %v991 = vtanh.pop %v599
        %v992 = vtanh.pop %v601
        %v993 = vtanh.pop %v688
        %v994 = vtanh.pop %v690
        %v995 = vtanh.pop %v777
        %v996 = vtanh.pop %v779
        %v997 = vtanh.pop %v866
        %v998 = vtanh.pop %v868
        %v999 = vtanh.pop %v953
        %v1000 = vtanh.pop %v427
        %v1001 = vtanh.pop %v429
        %v1002 = vtanh.pop %v516
        %v1003 = vtanh.pop %v518
        %v1004 = vtanh.pop %v605
        %v1005 = vtanh.pop %v607
        %v1006 = vtanh.pop %v694
        %v1007 = vtanh.pop %v696
        %v1008 = vtanh.pop %v783
        %v1009 = vtanh.pop %v785
        %v1010 = vtanh.pop %v872
        %v1011 = vtanh.pop %v874
        %v1012 = vtanh.pop %v958
        %v1013 = vld [vmem:[%s3] sm:$0x1]
        %v1015 = vsel %vm329, %v1013, 0
        %1017 = vmatprep.subr.mxu0 0.0
        %1018 = vmatpush1.msra.mxu0 0.0
        %1019 = vmatprep.subr.mxu0 0.0
        %1020 = vmatpush1.msra.mxu0 0.0
        %1021 = vmatprep.subr.mxu0 0.0
        %1022 = vmatpush1.msra.mxu0 0.0
        %1023 = vmatprep.subr.mxu0 0.0
        %1024 = vmatpush1.msra.mxu0 0.0
        %1025 = vmatprep.subr.mxu0 0.0
        %1026 = vmatpush1.msra.mxu0 0.0
        %1027 = vmatprep.subr.mxu0 0.0
        %1028 = vmatpush1.msra.mxu0 0.0
        %1029 = vmatprep.subr.mxu0 0.0
        %1030 = vmatpush1.msra.mxu0 0.0
        %1031 = vmatprep.subr.mxu0 0.0
        %1032 = vmatpush1.msra.mxu0 0.0
        %1033 = vmatprep.subr.mxu0 0.0
        %1034 = vmatpush1.msra.mxu0 0.0
        %1035 = vmatprep.subr.mxu0 0.0
        %1036 = vmatpush1.msra.mxu0 0.0
        %1037 = vmatprep.subr.mxu0 0.0
        %1038 = vmatpush1.msra.mxu0 0.0
        %1039 = vmatprep.subr.mxu0 0.0
        %1040 = vmatpush1.msra.mxu0 0.0
        %1041 = vmatprep.subr.mxu0 %v1001
        %1042 = vmatpush1.msra.mxu0 %v1000
        %1043 = vmatprep.subr.mxu0 %v988
        %1044 = vmatpush1.msra.mxu0 %v987
        %1045 = vmatprep.subr.mxu0 %v975
        %1046 = vmatpush1.msra.mxu0 %v974
        %1047 = vmatprep.subr.mxu0 %v962
        %1048 = vmatpush1.msra.mxu0 %v961
        %1049 = vmatprep.subr.mxu0 0.0
        %1050 = vmatpush2.msra.mxu0 0.0
        %1051 = vmatprep.subr.mxu0 0.0
        %1052 = vmatpush2.msra.mxu0 0.0
        %1053 = vmatprep.subr.mxu0 0.0
        %1054 = vmatpush2.msra.mxu0 0.0
        %1055 = vmatprep.subr.mxu0 0.0
        %1056 = vmatpush2.msra.mxu0 0.0
        %1057 = vmatprep.subr.mxu0 0.0
        %1058 = vmatpush2.msra.mxu0 0.0
        %1059 = vmatprep.subr.mxu0 0.0
        %1060 = vmatpush2.msra.mxu0 0.0
        %1061 = vmatprep.subr.mxu0 0.0
        %1062 = vmatpush2.msra.mxu0 0.0
        %1063 = vmatprep.subr.mxu0 0.0
        %1064 = vmatpush2.msra.mxu0 0.0
        %1065 = vmatprep.subr.mxu0 0.0
        %1066 = vmatpush2.msra.mxu0 0.0
        %1067 = vmatprep.subr.mxu0 0.0
        %1068 = vmatpush2.msra.mxu0 0.0
        %1069 = vmatprep.subr.mxu0 0.0
        %1070 = vmatpush2.msra.mxu0 0.0
        %1071 = vmatprep.subr.mxu0 0.0
        %1072 = vmatpush2.msra.mxu0 0.0
        %1073 = vmatprep.subr.mxu0 0.0
        %1074 = vmatpush2.msra.mxu0 0.0
        %1075 = vmatprep.subr.mxu0 0.0
        %1076 = vmatpush2.msra.mxu0 0.0
        %1077 = vmatprep.subr.mxu0 0.0
        %1078 = vmatpush2.msra.mxu0 0.0
        %1079 = vmatprep.subr.mxu0 0.0
        %1080 = vmatpush2.msra.mxu0 0.0
        %1081 = vmatprep.mubr.f32.mxu0 0.0
        %1082 = vmatmul.mubr.f32.gmra.mxu0 %v1015
        %v1083 = vpop.f32.mrf.mxu0
        %v1084 = vadd.f32 0.0, %v1083
        %v1085 = vpop.f32.mrf.mxu0
        %v1086 = vadd.f32 0.0, %v1085
        %1087 = vdwg.mxu0
        %1088 = vmatprep.subr.mxu0 0.0
        %1089 = vmatpush1.msra.mxu0 0.0
        %1090 = vmatprep.subr.mxu0 0.0
        %1091 = vmatpush1.msra.mxu0 0.0
        %1092 = vmatprep.subr.mxu0 0.0
        %1093 = vmatpush1.msra.mxu0 0.0
        %1094 = vmatprep.subr.mxu0 0.0
        %1095 = vmatpush1.msra.mxu0 0.0
        %1096 = vmatprep.subr.mxu0 0.0
        %1097 = vmatpush1.msra.mxu0 0.0
        %1098 = vmatprep.subr.mxu0 0.0
        %1099 = vmatpush1.msra.mxu0 0.0
        %1100 = vmatprep.subr.mxu0 0.0
        %1101 = vmatpush1.msra.mxu0 0.0
        %1102 = vmatprep.subr.mxu0 0.0
        %1103 = vmatpush1.msra.mxu0 0.0
        %1104 = vmatprep.subr.mxu0 0.0
        %1105 = vmatpush1.msra.mxu0 0.0
        %1106 = vmatprep.subr.mxu0 0.0
        %1107 = vmatpush1.msra.mxu0 0.0
        %1108 = vmatprep.subr.mxu0 0.0
        %1109 = vmatpush1.msra.mxu0 0.0
        %1110 = vmatprep.subr.mxu0 0.0
        %1111 = vmatpush1.msra.mxu0 0.0
        %1112 = vmatprep.subr.mxu0 %v1003
        %1113 = vmatpush1.msra.mxu0 %v1002
        %1114 = vmatprep.subr.mxu0 %v990
        %1115 = vmatpush1.msra.mxu0 %v989
        %1116 = vmatprep.subr.mxu0 %v977
        %1117 = vmatpush1.msra.mxu0 %v976
        %1118 = vmatprep.subr.mxu0 %v964
        %1119 = vmatpush1.msra.mxu0 %v963
        %1120 = vmatprep.subr.mxu0 0.0
        %1121 = vmatpush2.msra.mxu0 0.0
        %1122 = vmatprep.subr.mxu0 0.0
        %1123 = vmatpush2.msra.mxu0 0.0
        %1124 = vmatprep.subr.mxu0 0.0
        %1125 = vmatpush2.msra.mxu0 0.0
        %1126 = vmatprep.subr.mxu0 0.0
        %1127 = vmatpush2.msra.mxu0 0.0
        %1128 = vmatprep.subr.mxu0 0.0
        %1129 = vmatpush2.msra.mxu0 0.0
        %1130 = vmatprep.subr.mxu0 0.0
        %1131 = vmatpush2.msra.mxu0 0.0
        %1132 = vmatprep.subr.mxu0 0.0
        %1133 = vmatpush2.msra.mxu0 0.0
        %1134 = vmatprep.subr.mxu0 0.0
        %1135 = vmatpush2.msra.mxu0 0.0
        %1136 = vmatprep.subr.mxu0 0.0
        %1137 = vmatpush2.msra.mxu0 0.0
        %1138 = vmatprep.subr.mxu0 0.0
        %1139 = vmatpush2.msra.mxu0 0.0
        %1140 = vmatprep.subr.mxu0 0.0
        %1141 = vmatpush2.msra.mxu0 0.0
        %1142 = vmatprep.subr.mxu0 0.0
        %1143 = vmatpush2.msra.mxu0 0.0
        %1144 = vmatprep.subr.mxu0 0.0
        %1145 = vmatpush2.msra.mxu0 0.0
        %1146 = vmatprep.subr.mxu0 0.0
        %1147 = vmatpush2.msra.mxu0 0.0
        %1148 = vmatprep.subr.mxu0 0.0
        %1149 = vmatpush2.msra.mxu0 0.0
        %1150 = vmatprep.subr.mxu0 0.0
        %1151 = vmatpush2.msra.mxu0 0.0
        %1152 = vmatprep.mubr.f32.mxu0 0.0
        %1153 = vmatmul.mubr.f32.gmra.mxu0 %v1015
        %v1154 = vpop.f32.mrf.mxu0
        %v1155 = vadd.f32 0.0, %v1154
        %v1156 = vpop.f32.mrf.mxu0
        %v1157 = vadd.f32 0.0, %v1156
        %1158 = vdwg.mxu0
        %1159 = vmatprep.subr.mxu0 0.0
        %1160 = vmatpush1.msra.mxu0 0.0
        %1161 = vmatprep.subr.mxu0 0.0
        %1162 = vmatpush1.msra.mxu0 0.0
        %1163 = vmatprep.subr.mxu0 0.0
        %1164 = vmatpush1.msra.mxu0 0.0
        %1165 = vmatprep.subr.mxu0 0.0
        %1166 = vmatpush1.msra.mxu0 0.0
        %1167 = vmatprep.subr.mxu0 0.0
        %1168 = vmatpush1.msra.mxu0 0.0
        %1169 = vmatprep.subr.mxu0 0.0
        %1170 = vmatpush1.msra.mxu0 0.0
        %1171 = vmatprep.subr.mxu0 0.0
        %1172 = vmatpush1.msra.mxu0 0.0
        %1173 = vmatprep.subr.mxu0 0.0
        %1174 = vmatpush1.msra.mxu0 0.0
        %1175 = vmatprep.subr.mxu0 0.0
        %1176 = vmatpush1.msra.mxu0 0.0
        %1177 = vmatprep.subr.mxu0 0.0
        %1178 = vmatpush1.msra.mxu0 0.0
        %1179 = vmatprep.subr.mxu0 0.0
        %1180 = vmatpush1.msra.mxu0 0.0
        %1181 = vmatprep.subr.mxu0 0.0
        %1182 = vmatpush1.msra.mxu0 0.0
        %1183 = vmatprep.subr.mxu0 %v1005
        %1184 = vmatpush1.msra.mxu0 %v1004
        %1185 = vmatprep.subr.mxu0 %v992
        %1186 = vmatpush1.msra.mxu0 %v991
        %1187 = vmatprep.subr.mxu0 %v979
        %1188 = vmatpush1.msra.mxu0 %v978
        %1189 = vmatprep.subr.mxu0 %v966
        %1190 = vmatpush1.msra.mxu0 %v965
        %1191 = vmatprep.subr.mxu0 0.0
        %1192 = vmatpush2.msra.mxu0 0.0
        %1193 = vmatprep.subr.mxu0 0.0
        %1194 = vmatpush2.msra.mxu0 0.0
        %1195 = vmatprep.subr.mxu0 0.0
        %1196 = vmatpush2.msra.mxu0 0.0
        %1197 = vmatprep.subr.mxu0 0.0
        %1198 = vmatpush2.msra.mxu0 0.0
        %1199 = vmatprep.subr.mxu0 0.0
        %1200 = vmatpush2.msra.mxu0 0.0
        %1201 = vmatprep.subr.mxu0 0.0
        %1202 = vmatpush2.msra.mxu0 0.0
        %1203 = vmatprep.subr.mxu0 0.0
        %1204 = vmatpush2.msra.mxu0 0.0
        %1205 = vmatprep.subr.mxu0 0.0
        %1206 = vmatpush2.msra.mxu0 0.0
        %1207 = vmatprep.subr.mxu0 0.0
        %1208 = vmatpush2.msra.mxu0 0.0
        %1209 = vmatprep.subr.mxu0 0.0
        %1210 = vmatpush2.msra.mxu0 0.0
        %1211 = vmatprep.subr.mxu0 0.0
        %1212 = vmatpush2.msra.mxu0 0.0
        %1213 = vmatprep.subr.mxu0 0.0
        %1214 = vmatpush2.msra.mxu0 0.0
        %1215 = vmatprep.subr.mxu0 0.0
        %1216 = vmatpush2.msra.mxu0 0.0
        %1217 = vmatprep.subr.mxu0 0.0
        %1218 = vmatpush2.msra.mxu0 0.0
        %1219 = vmatprep.subr.mxu0 0.0
        %1220 = vmatpush2.msra.mxu0 0.0
        %1221 = vmatprep.subr.mxu0 0.0
        %1222 = vmatpush2.msra.mxu0 0.0
        %1223 = vmatprep.mubr.f32.mxu0 0.0
        %1224 = vmatmul.mubr.f32.gmra.mxu0 %v1015
        %v1225 = vpop.f32.mrf.mxu0
        %v1226 = vadd.f32 0.0, %v1225
        %v1227 = vpop.f32.mrf.mxu0
        %v1228 = vadd.f32 0.0, %v1227
        %1229 = vdwg.mxu0
        %1230 = vmatprep.subr.mxu0 0.0
        %1231 = vmatpush1.msra.mxu0 0.0
        %1232 = vmatprep.subr.mxu0 0.0
        %1233 = vmatpush1.msra.mxu0 0.0
        %1234 = vmatprep.subr.mxu0 0.0
        %1235 = vmatpush1.msra.mxu0 0.0
        %1236 = vmatprep.subr.mxu0 0.0
        %1237 = vmatpush1.msra.mxu0 0.0
        %1238 = vmatprep.subr.mxu0 0.0
        %1239 = vmatpush1.msra.mxu0 0.0
        %1240 = vmatprep.subr.mxu0 0.0
        %1241 = vmatpush1.msra.mxu0 0.0
        %1242 = vmatprep.subr.mxu0 0.0
        %1243 = vmatpush1.msra.mxu0 0.0
        %1244 = vmatprep.subr.mxu0 0.0
        %1245 = vmatpush1.msra.mxu0 0.0
        %1246 = vmatprep.subr.mxu0 0.0
        %1247 = vmatpush1.msra.mxu0 0.0
        %1248 = vmatprep.subr.mxu0 0.0
        %1249 = vmatpush1.msra.mxu0 0.0
        %1250 = vmatprep.subr.mxu0 0.0
        %1251 = vmatpush1.msra.mxu0 0.0
        %1252 = vmatprep.subr.mxu0 0.0
        %1253 = vmatpush1.msra.mxu0 0.0
        %1254 = vmatprep.subr.mxu0 %v1007
        %1255 = vmatpush1.msra.mxu0 %v1006
        %1256 = vmatprep.subr.mxu0 %v994
        %1257 = vmatpush1.msra.mxu0 %v993
        %1258 = vmatprep.subr.mxu0 %v981
        %1259 = vmatpush1.msra.mxu0 %v980
        %1260 = vmatprep.subr.mxu0 %v968
        %1261 = vmatpush1.msra.mxu0 %v967
        %1262 = vmatprep.subr.mxu0 0.0
        %1263 = vmatpush2.msra.mxu0 0.0
        %1264 = vmatprep.subr.mxu0 0.0
        %1265 = vmatpush2.msra.mxu0 0.0
        %1266 = vmatprep.subr.mxu0 0.0
        %1267 = vmatpush2.msra.mxu0 0.0
        %1268 = vmatprep.subr.mxu0 0.0
        %1269 = vmatpush2.msra.mxu0 0.0
        %1270 = vmatprep.subr.mxu0 0.0
        %1271 = vmatpush2.msra.mxu0 0.0
        %1272 = vmatprep.subr.mxu0 0.0
        %1273 = vmatpush2.msra.mxu0 0.0
        %1274 = vmatprep.subr.mxu0 0.0
        %1275 = vmatpush2.msra.mxu0 0.0
        %1276 = vmatprep.subr.mxu0 0.0
        %1277 = vmatpush2.msra.mxu0 0.0
        %1278 = vmatprep.subr.mxu0 0.0
        %1279 = vmatpush2.msra.mxu0 0.0
        %1280 = vmatprep.subr.mxu0 0.0
        %1281 = vmatpush2.msra.mxu0 0.0
        %1282 = vmatprep.subr.mxu0 0.0
        %1283 = vmatpush2.msra.mxu0 0.0
        %1284 = vmatprep.subr.mxu0 0.0
        %1285 = vmatpush2.msra.mxu0 0.0
        %1286 = vmatprep.subr.mxu0 0.0
        %1287 = vmatpush2.msra.mxu0 0.0
        %1288 = vmatprep.subr.mxu0 0.0
        %1289 = vmatpush2.msra.mxu0 0.0
        %1290 = vmatprep.subr.mxu0 0.0
        %1291 = vmatpush2.msra.mxu0 0.0
        %1292 = vmatprep.subr.mxu0 0.0
        %1293 = vmatpush2.msra.mxu0 0.0
        %1294 = vmatprep.mubr.f32.mxu0 0.0
        %1295 = vmatmul.mubr.f32.gmra.mxu0 %v1015
        %v1296 = vpop.f32.mrf.mxu0
        %v1297 = vadd.f32 0.0, %v1296
        %v1298 = vpop.f32.mrf.mxu0
        %v1299 = vadd.f32 0.0, %v1298
        %1300 = vdwg.mxu0
        %1301 = vmatprep.subr.mxu0 0.0
        %1302 = vmatpush1.msra.mxu0 0.0
        %1303 = vmatprep.subr.mxu0 0.0
        %1304 = vmatpush1.msra.mxu0 0.0
        %1305 = vmatprep.subr.mxu0 0.0
        %1306 = vmatpush1.msra.mxu0 0.0
        %1307 = vmatprep.subr.mxu0 0.0
        %1308 = vmatpush1.msra.mxu0 0.0
        %1309 = vmatprep.subr.mxu0 0.0
        %1310 = vmatpush1.msra.mxu0 0.0
        %1311 = vmatprep.subr.mxu0 0.0
        %1312 = vmatpush1.msra.mxu0 0.0
        %1313 = vmatprep.subr.mxu0 0.0
        %1314 = vmatpush1.msra.mxu0 0.0
        %1315 = vmatprep.subr.mxu0 0.0
        %1316 = vmatpush1.msra.mxu0 0.0
        %1317 = vmatprep.subr.mxu0 0.0
        %1318 = vmatpush1.msra.mxu0 0.0
        %1319 = vmatprep.subr.mxu0 0.0
        %1320 = vmatpush1.msra.mxu0 0.0
        %1321 = vmatprep.subr.mxu0 0.0
        %1322 = vmatpush1.msra.mxu0 0.0
        %1323 = vmatprep.subr.mxu0 0.0
        %1324 = vmatpush1.msra.mxu0 0.0
        %1325 = vmatprep.subr.mxu0 %v1009
        %1326 = vmatpush1.msra.mxu0 %v1008
        %1327 = vmatprep.subr.mxu0 %v996
        %1328 = vmatpush1.msra.mxu0 %v995
        %1329 = vmatprep.subr.mxu0 %v983
        %1330 = vmatpush1.msra.mxu0 %v982
        %1331 = vmatprep.subr.mxu0 %v970
        %1332 = vmatpush1.msra.mxu0 %v969
        %1333 = vmatprep.subr.mxu0 0.0
        %1334 = vmatpush2.msra.mxu0 0.0
        %1335 = vmatprep.subr.mxu0 0.0
        %1336 = vmatpush2.msra.mxu0 0.0
        %1337 = vmatprep.subr.mxu0 0.0
        %1338 = vmatpush2.msra.mxu0 0.0
        %1339 = vmatprep.subr.mxu0 0.0
        %1340 = vmatpush2.msra.mxu0 0.0
        %1341 = vmatprep.subr.mxu0 0.0
        %1342 = vmatpush2.msra.mxu0 0.0
        %1343 = vmatprep.subr.mxu0 0.0
        %1344 = vmatpush2.msra.mxu0 0.0
        %1345 = vmatprep.subr.mxu0 0.0
        %1346 = vmatpush2.msra.mxu0 0.0
        %1347 = vmatprep.subr.mxu0 0.0
        %1348 = vmatpush2.msra.mxu0 0.0
        %1349 = vmatprep.subr.mxu0 0.0
        %1350 = vmatpush2.msra.mxu0 0.0
        %1351 = vmatprep.subr.mxu0 0.0
        %1352 = vmatpush2.msra.mxu0 0.0
        %1353 = vmatprep.subr.mxu0 0.0
        %1354 = vmatpush2.msra.mxu0 0.0
        %1355 = vmatprep.subr.mxu0 0.0
        %1356 = vmatpush2.msra.mxu0 0.0
        %1357 = vmatprep.subr.mxu0 0.0
        %1358 = vmatpush2.msra.mxu0 0.0
        %1359 = vmatprep.subr.mxu0 0.0
        %1360 = vmatpush2.msra.mxu0 0.0
        %1361 = vmatprep.subr.mxu0 0.0
        %1362 = vmatpush2.msra.mxu0 0.0
        %1363 = vmatprep.subr.mxu0 0.0
        %1364 = vmatpush2.msra.mxu0 0.0
        %1365 = vmatprep.mubr.f32.mxu0 0.0
        %1366 = vmatmul.mubr.f32.gmra.mxu0 %v1015
        %v1367 = vpop.f32.mrf.mxu0
        %v1368 = vadd.f32 0.0, %v1367
        %v1369 = vpop.f32.mrf.mxu0
        %v1370 = vadd.f32 0.0, %v1369
        %1371 = vdwg.mxu0
        %1372 = vmatprep.subr.mxu0 0.0
        %1373 = vmatpush1.msra.mxu0 0.0
        %1374 = vmatprep.subr.mxu0 0.0
        %1375 = vmatpush1.msra.mxu0 0.0
        %1376 = vmatprep.subr.mxu0 0.0
        %1377 = vmatpush1.msra.mxu0 0.0
        %1378 = vmatprep.subr.mxu0 0.0
        %1379 = vmatpush1.msra.mxu0 0.0
        %1380 = vmatprep.subr.mxu0 0.0
        %1381 = vmatpush1.msra.mxu0 0.0
        %1382 = vmatprep.subr.mxu0 0.0
        %1383 = vmatpush1.msra.mxu0 0.0
        %1384 = vmatprep.subr.mxu0 0.0
        %1385 = vmatpush1.msra.mxu0 0.0
        %1386 = vmatprep.subr.mxu0 0.0
        %1387 = vmatpush1.msra.mxu0 0.0
        %1388 = vmatprep.subr.mxu0 0.0
        %1389 = vmatpush1.msra.mxu0 0.0
        %1390 = vmatprep.subr.mxu0 0.0
        %1391 = vmatpush1.msra.mxu0 0.0
        %1392 = vmatprep.subr.mxu0 0.0
        %1393 = vmatpush1.msra.mxu0 0.0
        %1394 = vmatprep.subr.mxu0 0.0
        %1395 = vmatpush1.msra.mxu0 0.0
        %1396 = vmatprep.subr.mxu0 %v1011
        %1397 = vmatpush1.msra.mxu0 %v1010
        %1398 = vmatprep.subr.mxu0 %v998
        %1399 = vmatpush1.msra.mxu0 %v997
        %1400 = vmatprep.subr.mxu0 %v985
        %1401 = vmatpush1.msra.mxu0 %v984
        %1402 = vmatprep.subr.mxu0 %v972
        %1403 = vmatpush1.msra.mxu0 %v971
        %1404 = vmatprep.subr.mxu0 0.0
        %1405 = vmatpush2.msra.mxu0 0.0
        %1406 = vmatprep.subr.mxu0 0.0
        %1407 = vmatpush2.msra.mxu0 0.0
        %1408 = vmatprep.subr.mxu0 0.0
        %1409 = vmatpush2.msra.mxu0 0.0
        %1410 = vmatprep.subr.mxu0 0.0
        %1411 = vmatpush2.msra.mxu0 0.0
        %1412 = vmatprep.subr.mxu0 0.0
        %1413 = vmatpush2.msra.mxu0 0.0
        %1414 = vmatprep.subr.mxu0 0.0
        %1415 = vmatpush2.msra.mxu0 0.0
        %1416 = vmatprep.subr.mxu0 0.0
        %1417 = vmatpush2.msra.mxu0 0.0
        %1418 = vmatprep.subr.mxu0 0.0
        %1419 = vmatpush2.msra.mxu0 0.0
        %1420 = vmatprep.subr.mxu0 0.0
        %1421 = vmatpush2.msra.mxu0 0.0
        %1422 = vmatprep.subr.mxu0 0.0
        %1423 = vmatpush2.msra.mxu0 0.0
        %1424 = vmatprep.subr.mxu0 0.0
        %1425 = vmatpush2.msra.mxu0 0.0
        %1426 = vmatprep.subr.mxu0 0.0
        %1427 = vmatpush2.msra.mxu0 0.0
        %1428 = vmatprep.subr.mxu0 0.0
        %1429 = vmatpush2.msra.mxu0 0.0
        %1430 = vmatprep.subr.mxu0 0.0
        %1431 = vmatpush2.msra.mxu0 0.0
        %1432 = vmatprep.subr.mxu0 0.0
        %1433 = vmatpush2.msra.mxu0 0.0
        %1434 = vmatprep.subr.mxu0 0.0
        %1435 = vmatpush2.msra.mxu0 0.0
        %1436 = vmatprep.mubr.f32.mxu0 0.0
        %1437 = vmatmul.mubr.f32.gmra.mxu0 %v1015
        %v1438 = vpop.f32.mrf.mxu0
        %v1439 = vadd.f32 0.0, %v1438
        %v1440 = vpop.f32.mrf.mxu0
        %v1441 = vadd.f32 0.0, %v1440
        %1442 = vdwg.mxu0
        %1443 = vmatprep.subr.mxu0 0.0
        %1444 = vmatpush1.msra.mxu0 0.0
        %1445 = vmatprep.subr.mxu0 0.0
        %1446 = vmatpush1.msra.mxu0 0.0
        %1447 = vmatprep.subr.mxu0 0.0
        %1448 = vmatpush1.msra.mxu0 0.0
        %1449 = vmatprep.subr.mxu0 0.0
        %1450 = vmatpush1.msra.mxu0 0.0
        %1451 = vmatprep.subr.mxu0 0.0
        %1452 = vmatpush1.msra.mxu0 0.0
        %1453 = vmatprep.subr.mxu0 0.0
        %1454 = vmatpush1.msra.mxu0 0.0
        %1455 = vmatprep.subr.mxu0 0.0
        %1456 = vmatpush1.msra.mxu0 0.0
        %1457 = vmatprep.subr.mxu0 0.0
        %1458 = vmatpush1.msra.mxu0 0.0
        %1459 = vmatprep.subr.mxu0 0.0
        %1460 = vmatpush1.msra.mxu0 0.0
        %1461 = vmatprep.subr.mxu0 0.0
        %1462 = vmatpush1.msra.mxu0 0.0
        %1463 = vmatprep.subr.mxu0 0.0
        %1464 = vmatpush1.msra.mxu0 0.0
        %1465 = vmatprep.subr.mxu0 0.0
        %1466 = vmatpush1.msra.mxu0 0.0
        %1467 = vmatprep.subr.mxu0 0.0
        %1468 = vmatpush1.msra.mxu0 %v1012
        %1469 = vmatprep.subr.mxu0 0.0
        %1470 = vmatpush1.msra.mxu0 %v999
        %1471 = vmatprep.subr.mxu0 0.0
        %1472 = vmatpush1.msra.mxu0 %v986
        %1473 = vmatprep.subr.mxu0 0.0
        %1474 = vmatpush1.msra.mxu0 %v973
        %1475 = vmatprep.subr.mxu0 0.0
        %1476 = vmatpush2.msra.mxu0 0.0
        %1477 = vmatprep.subr.mxu0 0.0
        %1478 = vmatpush2.msra.mxu0 0.0
        %1479 = vmatprep.subr.mxu0 0.0
        %1480 = vmatpush2.msra.mxu0 0.0
        %1481 = vmatprep.subr.mxu0 0.0
        %1482 = vmatpush2.msra.mxu0 0.0
        %1483 = vmatprep.subr.mxu0 0.0
        %1484 = vmatpush2.msra.mxu0 0.0
        %1485 = vmatprep.subr.mxu0 0.0
        %1486 = vmatpush2.msra.mxu0 0.0
        %1487 = vmatprep.subr.mxu0 0.0
        %1488 = vmatpush2.msra.mxu0 0.0
        %1489 = vmatprep.subr.mxu0 0.0
        %1490 = vmatpush2.msra.mxu0 0.0
        %1491 = vmatprep.subr.mxu0 0.0
        %1492 = vmatpush2.msra.mxu0 0.0
        %1493 = vmatprep.subr.mxu0 0.0
        %1494 = vmatpush2.msra.mxu0 0.0
        %1495 = vmatprep.subr.mxu0 0.0
        %1496 = vmatpush2.msra.mxu0 0.0
        %1497 = vmatprep.subr.mxu0 0.0
        %1498 = vmatpush2.msra.mxu0 0.0
        %1499 = vmatprep.subr.mxu0 0.0
        %1500 = vmatpush2.msra.mxu0 0.0
        %1501 = vmatprep.subr.mxu0 0.0
        %1502 = vmatpush2.msra.mxu0 0.0
        %1503 = vmatprep.subr.mxu0 0.0
        %1504 = vmatpush2.msra.mxu0 0.0
        %1505 = vmatprep.subr.mxu0 0.0
        %1506 = vmatpush2.msra.mxu0 0.0
        %1507 = vmatprep.mubr.f32.mxu0 0.0
        %1508 = vmatmul.mubr.f32.gmra.mxu0 %v1015
        %v1509 = vpop.f32.mrf.mxu0
        %v1510 = vadd.f32 0.0, %v1509
        %v1511 = vpop.f32.mrf.mxu0
        %1512 = vdwg.mxu0
        %vm1513 = vcmask 516096
        %1514 = vst.msk [vmem:[#allocation2] sm:$0x1] %vm1513, %v1084
        %1516 = vrot.lane.b32.xlu0 %v1084, 64
        %v1517 = vpop.permute.xlu0 %1516
        %1519 = vst.msk [vmem:[#allocation2 + $0x1] sm:$0x1] %vm1513, %v1517
        %1520 = vst.msk [vmem:[#allocation2 + $0x2] sm:$0x1] %vm1513, %v1086
        %1522 = vrot.lane.b32.xlu0 %v1086, 64
        %v1523 = vpop.permute.xlu0 %1522
        %1525 = vst.msk [vmem:[#allocation2 + $0x3] sm:$0x1] %vm1513, %v1523
        %1526 = vst.msk [vmem:[#allocation2 + $0x4] sm:$0x1] %vm1513, %v1155
        %1528 = vrot.lane.b32.xlu0 %v1155, 64
        %v1529 = vpop.permute.xlu0 %1528
        %1531 = vst.msk [vmem:[#allocation2 + $0x5] sm:$0x1] %vm1513, %v1529
        %1532 = vst.msk [vmem:[#allocation2 + $0x6] sm:$0x1] %vm1513, %v1157
        %1534 = vrot.lane.b32.xlu0 %v1157, 64
        %v1535 = vpop.permute.xlu0 %1534
        %1537 = vst.msk [vmem:[#allocation2 + $0x7] sm:$0x1] %vm1513, %v1535
        %1538 = vst.msk [vmem:[#allocation2 + $0x8] sm:$0x1] %vm1513, %v1226
        %1540 = vrot.lane.b32.xlu0 %v1226, 64
        %v1541 = vpop.permute.xlu0 %1540
        %1543 = vst.msk [vmem:[#allocation2 + $0x9] sm:$0x1] %vm1513, %v1541
        %1544 = vst.msk [vmem:[#allocation2 + $0xa] sm:$0x1] %vm1513, %v1228
        %1546 = vrot.lane.b32.xlu0 %v1228, 64
        %v1547 = vpop.permute.xlu0 %1546
        %1549 = vst.msk [vmem:[#allocation2 + $0xb] sm:$0x1] %vm1513, %v1547
        %1550 = vst.msk [vmem:[#allocation2 + $0xc] sm:$0x1] %vm1513, %v1297
        %1552 = vrot.lane.b32.xlu0 %v1297, 64
        %v1553 = vpop.permute.xlu0 %1552
        %1555 = vst.msk [vmem:[#allocation2 + $0xd] sm:$0x1] %vm1513, %v1553
        %1556 = vst.msk [vmem:[#allocation2 + $0xe] sm:$0x1] %vm1513, %v1299
        %1558 = vrot.lane.b32.xlu0 %v1299, 64
        %v1559 = vpop.permute.xlu0 %1558
        %1561 = vst.msk [vmem:[#allocation2 + $0xf] sm:$0x1] %vm1513, %v1559
        %1562 = vst.msk [vmem:[#allocation2 + $0x10] sm:$0x1] %vm1513, %v1368
        %1564 = vrot.lane.b32.xlu0 %v1368, 64
        %v1565 = vpop.permute.xlu0 %1564
        %1567 = vst.msk [vmem:[#allocation2 + $0x11] sm:$0x1] %vm1513, %v1565
        %1568 = vst.msk [vmem:[#allocation2 + $0x12] sm:$0x1] %vm1513, %v1370
        %1570 = vrot.lane.b32.xlu0 %v1370, 64
        %v1571 = vpop.permute.xlu0 %1570
        %1573 = vst.msk [vmem:[#allocation2 + $0x13] sm:$0x1] %vm1513, %v1571
        %1574 = vst.msk [vmem:[#allocation2 + $0x14] sm:$0x1] %vm1513, %v1439
        %1576 = vrot.lane.b32.xlu0 %v1439, 64
        %v1577 = vpop.permute.xlu0 %1576
        %1579 = vst.msk [vmem:[#allocation2 + $0x15] sm:$0x1] %vm1513, %v1577
        %1580 = vst.msk [vmem:[#allocation2 + $0x16] sm:$0x1] %vm1513, %v1441
        %1582 = vrot.lane.b32.xlu0 %v1441, 64
        %v1583 = vpop.permute.xlu0 %1582
        %1585 = vst.msk [vmem:[#allocation2 + $0x17] sm:$0x1] %vm1513, %v1583
        %1586 = vst.msk [vmem:[#allocation2 + $0x18] sm:$0x1] %vm1513, %v1510
        %v1587 = vld [vmem:[#allocation2] sm:$0xff]
        %v1588 = vld [vmem:[#allocation2 + $0x8] sm:$0xff]
        %v1589 = vld [vmem:[#allocation2 + $0x10] sm:$0xff]
        %v1590 = vld [vmem:[#allocation2 + $0x18] sm:$0x1]
        %vm1591 = vcmask 523264
        %v1592 = vsel %vm1591, %v1587, -inf
        %1593 = vmax.xlane.f32.xlu0 %v1592
        %v1594 = vpop.xlane.xlu0 %1593
        %v1595 = vsel %vm1591, %v1588, -inf
        %1596 = vmax.xlane.f32.xlu0 %v1595
        %v1597 = vpop.xlane.xlu0 %1596
        %v1598 = vsel %vm1591, %v1589, -inf
        %1599 = vmax.xlane.f32.xlu0 %v1598
        %v1600 = vpop.xlane.xlu0 %1599
        %v1601 = vsel %vm1513, %v1590, -inf
        %1602 = vmax.xlane.f32.xlu0 %v1601
        %v1603 = vpop.xlane.xlu0 %1602
        %v1604 = vsub.f32 %v1587, %v1594
        %v1605 = vsub.f32 %v1588, %v1597
        %v1606 = vsub.f32 %v1589, %v1600
        %v1607 = vsub.f32 %v1590, %v1603
        %v1608 = vmul.f32 %v1604, 1.442695
        %v1609 = vpow.pop %v1608
        %v1610 = vmul.f32 %v1605, 1.442695
        %v1611 = vpow.pop %v1610
        %v1612 = vmul.f32 %v1606, 1.442695
        %v1613 = vpow.pop %v1612
        %v1614 = vmul.f32 %v1607, 1.442695
        %v1615 = vpow.pop %v1614
        %v1616 = vsel %vm1591, %v1609, 0.0
        %1617 = vadd.xlane.f32.xlu0 %v1616
        %v1618 = vpop.xlane.xlu0 %1617
        %v1619 = vsel %vm1591, %v1611, 0.0
        %1620 = vadd.xlane.f32.xlu0 %v1619
        %v1621 = vpop.xlane.xlu0 %1620
        %v1622 = vsel %vm1591, %v1613, 0.0
        %1623 = vadd.xlane.f32.xlu0 %v1622
        %v1624 = vpop.xlane.xlu0 %1623
        %v1625 = vsel %vm1513, %v1615, 0.0
        %1626 = vadd.xlane.f32.xlu0 %v1625
        %v1627 = vpop.xlane.xlu0 %1626
        %v1628 = vrcp.pop %v1618
        %v1629 = vmul.f32 %v1609, %v1628
        %v1630 = vrcp.pop %v1621
        %v1631 = vmul.f32 %v1611, %v1630
        %v1632 = vrcp.pop %v1624
        %v1633 = vmul.f32 %v1613, %v1632
        %v1634 = vrcp.pop %v1627
        %v1635 = vmul.f32 %v1615, %v1634
        %v1636 = vlaneseq
        %vm1637 = vcmp.ge.s32.totalorder %v1636, 0
        %vm1638 = vcmp.lt.s32.totalorder %v1636, 64
        %vm1639 = vmand %vm1637, %vm1638
        %1640 = vst.msk [vmem:[#allocation3] sm:$0x1] %vm1639, %v1629
        %v1643 = vunpack.c.l.s4 1966171168
        %v1644 = vunpack.c.0.s8 %v1643
        %v1645 = vlaneseq
        %v1646 = vshrl.u32 %v1645, 7
        %v1647 = vsub.s32 %v1644, %v1646
        %v1648 = vrot.slane %v1629, %v1647
        %v1649 = vcombine.high %v1648, %v1648
        %v1651 = vunpack.c.l.s4 1966171168
        %v1652 = vunpack.c.0.s8 %v1651
        %v1653 = vlaneseq
        %v1654 = vshrl.u32 %v1653, 7
        %v1655 = vsub.s32 %v1652, %v1654
        %v1656 = vrot.slane %v1648, %v1655
        %v1658 = vunpack.c.l.s4 1966171168
        %v1659 = vunpack.c.0.s8 %v1658
        %v1660 = vlaneseq
        %v1661 = vshrl.u32 %v1660, 7
        %v1662 = vsub.s32 %v1659, %v1661
        %v1663 = vrot.slane %v1649, %v1662
        %1664 = vrot.lane.b32.xlu0 %v1663, 64
        %v1665 = vpop.permute.xlu0 %1664
        %vm1667 = vcmp.ge.s32.totalorder %v1636, 64
        %vm1668 = vcmp.lt.s32.totalorder %v1636, 128
        %vm1669 = vmand %vm1667, %vm1668
        %1670 = vst.msk [vmem:[#allocation3] sm:$0x1] %vm1669, %v1665
        %v1671 = vcombine.high %v1656, %v1656
        %1673 = vst.msk [vmem:[#allocation3 + $0x1] sm:$0x1] %vm1639, %v1671
        %v1674 = vcombine.high %v1663, %v1663
        %1675 = vrot.lane.b32.xlu0 %v1674, 64
        %v1676 = vpop.permute.xlu0 %1675
        %1678 = vst.msk [vmem:[#allocation3 + $0x1] sm:$0x1] %vm1669, %v1676
        %v1679 = vcombine.high %v1629, %v1629
        %v1681 = vunpack.c.l.s4 1966171168
        %v1682 = vunpack.c.0.s8 %v1681
        %v1683 = vlaneseq
        %v1684 = vshrl.u32 %v1683, 7
        %v1685 = vsub.s32 %v1682, %v1684
        %v1686 = vrot.slane %v1679, %v1685
        %v1688 = vunpack.c.l.s4 1966171168
        %v1689 = vunpack.c.0.s8 %v1688
        %v1690 = vlaneseq
        %v1691 = vshrl.u32 %v1690, 7
        %v1692 = vsub.s32 %v1689, %v1691
        %v1693 = vrot.slane %v1686, %v1692
        %1695 = vst.msk [vmem:[#allocation3 + $0x2] sm:$0x1] %vm1639, %v1693
        %v1696 = vcombine.high %v1686, %v1686
        %v1698 = vunpack.c.l.s4 1966171168
        %v1699 = vunpack.c.0.s8 %v1698
        %v1700 = vlaneseq
        %v1701 = vshrl.u32 %v1700, 7
        %v1702 = vsub.s32 %v1699, %v1701
        %v1703 = vrot.slane %v1696, %v1702
        %1704 = vrot.lane.b32.xlu0 %v1703, 64
        %v1705 = vpop.permute.xlu0 %1704
        %1707 = vst.msk [vmem:[#allocation3 + $0x2] sm:$0x1] %vm1669, %v1705
        %v1708 = vcombine.high %v1693, %v1693
        %1710 = vst.msk [vmem:[#allocation3 + $0x3] sm:$0x1] %vm1639, %v1708
        %v1711 = vcombine.high %v1703, %v1703
        %1712 = vrot.lane.b32.xlu0 %v1711, 64
        %v1713 = vpop.permute.xlu0 %1712
        %1715 = vst.msk [vmem:[#allocation3 + $0x3] sm:$0x1] %vm1669, %v1713
        %1716 = vst.msk [vmem:[#allocation3 + $0x4] sm:$0x1] %vm1639, %v1631
        %v1719 = vunpack.c.l.s4 1966171168
        %v1720 = vunpack.c.0.s8 %v1719
        %v1721 = vlaneseq
        %v1722 = vshrl.u32 %v1721, 7
        %v1723 = vsub.s32 %v1720, %v1722
        %v1724 = vrot.slane %v1631, %v1723
        %v1725 = vcombine.high %v1724, %v1724
        %v1727 = vunpack.c.l.s4 1966171168
        %v1728 = vunpack.c.0.s8 %v1727
        %v1729 = vlaneseq
        %v1730 = vshrl.u32 %v1729, 7
        %v1731 = vsub.s32 %v1728, %v1730
        %v1732 = vrot.slane %v1724, %v1731
        %v1734 = vunpack.c.l.s4 1966171168
        %v1735 = vunpack.c.0.s8 %v1734
        %v1736 = vlaneseq
        %v1737 = vshrl.u32 %v1736, 7
        %v1738 = vsub.s32 %v1735, %v1737
        %v1739 = vrot.slane %v1725, %v1738
        %1740 = vrot.lane.b32.xlu0 %v1739, 64
        %v1741 = vpop.permute.xlu0 %1740
        %1743 = vst.msk [vmem:[#allocation3 + $0x4] sm:$0x1] %vm1669, %v1741
        %v1744 = vcombine.high %v1732, %v1732
        %1746 = vst.msk [vmem:[#allocation3 + $0x5] sm:$0x1] %vm1639, %v1744
        %v1747 = vcombine.high %v1739, %v1739
        %1748 = vrot.lane.b32.xlu0 %v1747, 64
        %v1749 = vpop.permute.xlu0 %1748
        %1751 = vst.msk [vmem:[#allocation3 + $0x5] sm:$0x1] %vm1669, %v1749
        %v1752 = vcombine.high %v1631, %v1631
        %v1754 = vunpack.c.l.s4 1966171168
        %v1755 = vunpack.c.0.s8 %v1754
        %v1756 = vlaneseq
        %v1757 = vshrl.u32 %v1756, 7
        %v1758 = vsub.s32 %v1755, %v1757
        %v1759 = vrot.slane %v1752, %v1758
        %v1761 = vunpack.c.l.s4 1966171168
        %v1762 = vunpack.c.0.s8 %v1761
        %v1763 = vlaneseq
        %v1764 = vshrl.u32 %v1763, 7
        %v1765 = vsub.s32 %v1762, %v1764
        %v1766 = vrot.slane %v1759, %v1765
        %1768 = vst.msk [vmem:[#allocation3 + $0x6] sm:$0x1] %vm1639, %v1766
        %v1769 = vcombine.high %v1759, %v1759
        %v1771 = vunpack.c.l.s4 1966171168
        %v1772 = vunpack.c.0.s8 %v1771
        %v1773 = vlaneseq
        %v1774 = vshrl.u32 %v1773, 7
        %v1775 = vsub.s32 %v1772, %v1774
        %v1776 = vrot.slane %v1769, %v1775
        %1777 = vrot.lane.b32.xlu0 %v1776, 64
        %v1778 = vpop.permute.xlu0 %1777
        %1780 = vst.msk [vmem:[#allocation3 + $0x6] sm:$0x1] %vm1669, %v1778
        %v1781 = vcombine.high %v1766, %v1766
        %1783 = vst.msk [vmem:[#allocation3 + $0x7] sm:$0x1] %vm1639, %v1781
        %v1784 = vcombine.high %v1776, %v1776
        %1785 = vrot.lane.b32.xlu0 %v1784, 64
        %v1786 = vpop.permute.xlu0 %1785
        %1788 = vst.msk [vmem:[#allocation3 + $0x7] sm:$0x1] %vm1669, %v1786
        %1789 = vst.msk [vmem:[#allocation3 + $0x8] sm:$0x1] %vm1639, %v1633
        %v1792 = vunpack.c.l.s4 1966171168
        %v1793 = vunpack.c.0.s8 %v1792
        %v1794 = vlaneseq
        %v1795 = vshrl.u32 %v1794, 7
        %v1796 = vsub.s32 %v1793, %v1795
        %v1797 = vrot.slane %v1633, %v1796
        %v1798 = vcombine.high %v1797, %v1797
        %v1800 = vunpack.c.l.s4 1966171168
        %v1801 = vunpack.c.0.s8 %v1800
        %v1802 = vlaneseq
        %v1803 = vshrl.u32 %v1802, 7
        %v1804 = vsub.s32 %v1801, %v1803
        %v1805 = vrot.slane %v1797, %v1804
        %v1807 = vunpack.c.l.s4 1966171168
        %v1808 = vunpack.c.0.s8 %v1807
        %v1809 = vlaneseq
        %v1810 = vshrl.u32 %v1809, 7
        %v1811 = vsub.s32 %v1808, %v1810
        %v1812 = vrot.slane %v1798, %v1811
        %1813 = vrot.lane.b32.xlu0 %v1812, 64
        %v1814 = vpop.permute.xlu0 %1813
        %1816 = vst.msk [vmem:[#allocation3 + $0x8] sm:$0x1] %vm1669, %v1814
        %v1817 = vcombine.high %v1805, %v1805
        %1819 = vst.msk [vmem:[#allocation3 + $0x9] sm:$0x1] %vm1639, %v1817
        %v1820 = vcombine.high %v1812, %v1812
        %1821 = vrot.lane.b32.xlu0 %v1820, 64
        %v1822 = vpop.permute.xlu0 %1821
        %1824 = vst.msk [vmem:[#allocation3 + $0x9] sm:$0x1] %vm1669, %v1822
        %v1825 = vcombine.high %v1633, %v1633
        %v1827 = vunpack.c.l.s4 1966171168
        %v1828 = vunpack.c.0.s8 %v1827
        %v1829 = vlaneseq
        %v1830 = vshrl.u32 %v1829, 7
        %v1831 = vsub.s32 %v1828, %v1830
        %v1832 = vrot.slane %v1825, %v1831
        %v1834 = vunpack.c.l.s4 1966171168
        %v1835 = vunpack.c.0.s8 %v1834
        %v1836 = vlaneseq
        %v1837 = vshrl.u32 %v1836, 7
        %v1838 = vsub.s32 %v1835, %v1837
        %v1839 = vrot.slane %v1832, %v1838
        %1841 = vst.msk [vmem:[#allocation3 + $0xa] sm:$0x1] %vm1639, %v1839
        %v1842 = vcombine.high %v1832, %v1832
        %v1844 = vunpack.c.l.s4 1966171168
        %v1845 = vunpack.c.0.s8 %v1844
        %v1846 = vlaneseq
        %v1847 = vshrl.u32 %v1846, 7
        %v1848 = vsub.s32 %v1845, %v1847
        %v1849 = vrot.slane %v1842, %v1848
        %1850 = vrot.lane.b32.xlu0 %v1849, 64
        %v1851 = vpop.permute.xlu0 %1850
        %1853 = vst.msk [vmem:[#allocation3 + $0xa] sm:$0x1] %vm1669, %v1851
        %v1854 = vcombine.high %v1839, %v1839
        %1856 = vst.msk [vmem:[#allocation3 + $0xb] sm:$0x1] %vm1639, %v1854
        %v1857 = vcombine.high %v1849, %v1849
        %1858 = vrot.lane.b32.xlu0 %v1857, 64
        %v1859 = vpop.permute.xlu0 %1858
        %1861 = vst.msk [vmem:[#allocation3 + $0xb] sm:$0x1] %vm1669, %v1859
        %1862 = vst.msk [vmem:[#allocation3 + $0xc] sm:$0x1] %vm1639, %v1635
        %v1863 = vld [vmem:[#allocation3] sm:$0xff]
        %v1864 = vld [vmem:[#allocation3 + $0x8] sm:$0x1f]
        %v1867 = vlaneseq
        %v1868 = vshrl.u32 %v1867, 7
        %v1869 = vsub.s32 0, %v1868
        %v1870 = vrot.slane %v1863, %v1869
        %v1871 = vlaneseq
        %v1872 = vshrl.u32 %v1871, 7
        %v1873 = vsub.s32 1, %v1872
        %v1874 = vrot.slane %v1863, %v1873
        %v1875 = vlaneseq
        %v1876 = vshrl.u32 %v1875, 7
        %v1877 = vsub.s32 2, %v1876
        %v1878 = vrot.slane %v1863, %v1877
        %v1879 = vlaneseq
        %v1880 = vshrl.u32 %v1879, 7
        %v1881 = vsub.s32 3, %v1880
        %v1882 = vrot.slane %v1863, %v1881
        %v1883 = vlaneseq
        %v1884 = vshrl.u32 %v1883, 7
        %v1885 = vsub.s32 4, %v1884
        %v1886 = vrot.slane %v1863, %v1885
        %v1887 = vlaneseq
        %v1888 = vshrl.u32 %v1887, 7
        %v1889 = vsub.s32 5, %v1888
        %v1890 = vrot.slane %v1863, %v1889
        %v1891 = vlaneseq
        %v1892 = vshrl.u32 %v1891, 7
        %v1893 = vsub.s32 6, %v1892
        %v1894 = vrot.slane %v1863, %v1893
        %v1895 = vlaneseq
        %v1896 = vshrl.u32 %v1895, 7
        %v1897 = vsub.s32 7, %v1896
        %v1898 = vrot.slane %v1863, %v1897
        %v1899 = vlaneseq
        %v1900 = vshrl.u32 %v1899, 7
        %v1901 = vsub.s32 0, %v1900
        %v1902 = vrot.slane %v1864, %v1901
        %v1903 = vlaneseq
        %v1904 = vshrl.u32 %v1903, 7
        %v1905 = vsub.s32 1, %v1904
        %v1906 = vrot.slane %v1864, %v1905
        %v1907 = vlaneseq
        %v1908 = vshrl.u32 %v1907, 7
        %v1909 = vsub.s32 2, %v1908
        %v1910 = vrot.slane %v1864, %v1909
        %v1911 = vlaneseq
        %v1912 = vshrl.u32 %v1911, 7
        %v1913 = vsub.s32 3, %v1912
        %v1914 = vrot.slane %v1864, %v1913
        %v1915 = vlaneseq
        %v1916 = vshrl.u32 %v1915, 7
        %v1917 = vsub.s32 4, %v1916
        %v1918 = vrot.slane %v1864, %v1917
        %v1932 = vmul.f32 %v961, %v1870
        %v1933 = vmul.f32 %v962, %v1874
        %v1934 = vmul.f32 %v963, %v1878
        %v1935 = vmul.f32 %v964, %v1882
        %v1936 = vmul.f32 %v965, %v1886
        %v1937 = vmul.f32 %v966, %v1890
        %v1938 = vmul.f32 %v967, %v1894
        %v1939 = vmul.f32 %v968, %v1898
        %v1940 = vmul.f32 %v969, %v1902
        %v1941 = vmul.f32 %v970, %v1906
        %v1942 = vmul.f32 %v971, %v1910
        %v1943 = vmul.f32 %v972, %v1914
        %v1944 = vmul.f32 %v973, %v1918
        %v1945 = vmul.f32 %v974, %v1870
        %v1946 = vmul.f32 %v975, %v1874
        %v1947 = vmul.f32 %v976, %v1878
        %v1948 = vmul.f32 %v977, %v1882
        %v1949 = vmul.f32 %v978, %v1886
        %v1950 = vmul.f32 %v979, %v1890
        %v1951 = vmul.f32 %v980, %v1894
        %v1952 = vmul.f32 %v981, %v1898
        %v1953 = vmul.f32 %v982, %v1902
        %v1954 = vmul.f32 %v983, %v1906
        %v1955 = vmul.f32 %v984, %v1910
        %v1956 = vmul.f32 %v985, %v1914
        %v1957 = vmul.f32 %v986, %v1918
        %v1958 = vmul.f32 %v987, %v1870
        %v1959 = vmul.f32 %v988, %v1874
        %v1960 = vmul.f32 %v989, %v1878
        %v1961 = vmul.f32 %v990, %v1882
        %v1962 = vmul.f32 %v991, %v1886
        %v1963 = vmul.f32 %v992, %v1890
        %v1964 = vmul.f32 %v993, %v1894
        %v1965 = vmul.f32 %v994, %v1898
        %v1966 = vmul.f32 %v995, %v1902
        %v1967 = vmul.f32 %v996, %v1906
        %v1968 = vmul.f32 %v997, %v1910
        %v1969 = vmul.f32 %v998, %v1914
        %v1970 = vmul.f32 %v999, %v1918
        %v1971 = vmul.f32 %v1000, %v1870
        %v1972 = vmul.f32 %v1001, %v1874
        %v1973 = vmul.f32 %v1002, %v1878
        %v1974 = vmul.f32 %v1003, %v1882
        %v1975 = vmul.f32 %v1004, %v1886
        %v1976 = vmul.f32 %v1005, %v1890
        %v1977 = vmul.f32 %v1006, %v1894
        %v1978 = vmul.f32 %v1007, %v1898
        %v1979 = vmul.f32 %v1008, %v1902
        %v1980 = vmul.f32 %v1009, %v1906
        %v1981 = vmul.f32 %v1010, %v1910
        %v1982 = vmul.f32 %v1011, %v1914
        %v1983 = vmul.f32 %v1012, %v1918
        %v1984 = vadd.f32 %v1932, %v1933
        %v1985 = vadd.f32 %v1984, %v1934
        %v1986 = vadd.f32 %v1985, %v1935
        %v1987 = vadd.f32 %v1986, %v1936
        %v1988 = vadd.f32 %v1987, %v1937
        %v1989 = vadd.f32 %v1988, %v1938
        %v1990 = vadd.f32 %v1989, %v1939
        %v1991 = vadd.f32 %v1990, %v1940
        %v1992 = vadd.f32 %v1991, %v1941
        %v1993 = vadd.f32 %v1992, %v1942
        %v1994 = vadd.f32 %v1993, %v1943
        %v1995 = vsel %vm1591, %v1944, 0.0
        %v1996 = vadd.f32 %v1994, %v1995
        %1997 = vadd.xlane.f32.xlu0 %v1996
        %v1998 = vpop.xlane.xlu0 %1997
        %v1999 = vadd.f32 %v1945, %v1946
        %v2000 = vadd.f32 %v1999, %v1947
        %v2001 = vadd.f32 %v2000, %v1948
        %v2002 = vadd.f32 %v2001, %v1949
        %v2003 = vadd.f32 %v2002, %v1950
        %v2004 = vadd.f32 %v2003, %v1951
        %v2005 = vadd.f32 %v2004, %v1952
        %v2006 = vadd.f32 %v2005, %v1953
        %v2007 = vadd.f32 %v2006, %v1954
        %v2008 = vadd.f32 %v2007, %v1955
        %v2009 = vadd.f32 %v2008, %v1956
        %v2010 = vsel %vm1591, %v1957, 0.0
        %v2011 = vadd.f32 %v2009, %v2010
        %2012 = vadd.xlane.f32.xlu0 %v2011
        %v2013 = vpop.xlane.xlu0 %2012
        %v2014 = vadd.f32 %v1958, %v1959
        %v2015 = vadd.f32 %v2014, %v1960
        %v2016 = vadd.f32 %v2015, %v1961
        %v2017 = vadd.f32 %v2016, %v1962
        %v2018 = vadd.f32 %v2017, %v1963
        %v2019 = vadd.f32 %v2018, %v1964
        %v2020 = vadd.f32 %v2019, %v1965
        %v2021 = vadd.f32 %v2020, %v1966
        %v2022 = vadd.f32 %v2021, %v1967
        %v2023 = vadd.f32 %v2022, %v1968
        %v2024 = vadd.f32 %v2023, %v1969
        %v2025 = vsel %vm1591, %v1970, 0.0
        %v2026 = vadd.f32 %v2024, %v2025
        %2027 = vadd.xlane.f32.xlu0 %v2026
        %v2028 = vpop.xlane.xlu0 %2027
        %v2029 = vadd.f32 %v1971, %v1972
        %v2030 = vadd.f32 %v2029, %v1973
        %v2031 = vadd.f32 %v2030, %v1974
        %v2032 = vadd.f32 %v2031, %v1975
        %v2033 = vadd.f32 %v2032, %v1976
        %v2034 = vadd.f32 %v2033, %v1977
        %v2035 = vadd.f32 %v2034, %v1978
        %v2036 = vadd.f32 %v2035, %v1979
        %v2037 = vadd.f32 %v2036, %v1980
        %v2038 = vadd.f32 %v2037, %v1981
        %v2039 = vadd.f32 %v2038, %v1982
        %v2040 = vsel %vm1591, %v1983, 0.0
        %v2041 = vadd.f32 %v2039, %v2040
        %2042 = vadd.xlane.f32.xlu0 %v2041
        %v2043 = vpop.xlane.xlu0 %2042
        %v2044 = vmul.f32 %v1998, 0.04
        %v2045 = vmul.f32 %v2013, 0.04
        %v2046 = vmul.f32 %v2028, 0.04
        %v2047 = vmul.f32 %v2043, 0.04
        %v2048 = vld [vmem:[%s4] sm:$0xff]
        %v2049 = vld [vmem:[%s4 + $0x8] sm:$0xff]
        %v2050 = vld [vmem:[%s4 + $0x10] sm:$0xff]
        %v2051 = vld [vmem:[%s4 + $0x18] sm:$0xff]
        %v2052 = vmul.f32 %v2048, %v2044
        %v2053 = vmul.f32 %v2049, %v2045
        %v2054 = vmul.f32 %v2050, %v2046
        %v2055 = vmul.f32 %v2051, %v2047
        %v2056 = vadd.f32 %v2052, %v2053
        %v2057 = vadd.f32 %v2056, %v2054
        %v2058 = vadd.f32 %v2057, %v2055
        %v2059 = vrot.slane %v2058, 4
        %v2060 = vadd.f32 %v2058, %v2059
        %v2061 = vrot.slane %v2060, 2
        %v2062 = vadd.f32 %v2060, %v2061
        %v2063 = vrot.slane %v2062, 1
        %v2064 = vadd.f32 %v2062, %v2063
        %v2065 = vld [vmem:[%s5] sm:$0x1]
        %v2066 = vadd.f32 %v2064, %v2065
        %2067 = vst [vmem:[%s243] sm:$0x1] %v2066
        %s2068 = sand.u32 %s159, 1
        %s2069 = scalar_lea.sflag [#allocation5], %s2068
        %s2070 = sand.u32 %s159, 1
        %s2071 = scalar_lea.vmem [#allocation4], %s2070
        // Predicated region
        $region45: #{top_attention_forward.1} parent=43 // pred_check
          %p2072 = pneg %p169
        $region46: #{top_attention_forward.1} parent=43 // pred_check_branch
          %2074 = sbr.rel (%p2072) target = $region48
        $region47: #{top_attention_forward.1} parent=43 // pred_region
          %s2076 = ssub.s32 16, 16
          %2077 = vsyncadd %s2069, %s2076
          %s2078 = smul.addr %s20, 16
          %s2079 = scalar_lea.hbm %s6, %s2078
          %s2081 = sshll.u32 %s2071, 4
          %s2082 = int_to_ptr.vmem [resolvable:$true] %s2081
          %2084 = dma.vmem_to_hbm [thread:$0]  %s2082, 16, %s2079, %s2069
        $region48: #{top_attention_forward.1} parent=43 // pred_fallthru
          _
      $region44: #{top_attention_forward.1} parent=5 // pred_fallthru
        _
      %p2085 = scmp.le.s32.totalorder 2, %s15
      // Predicated region
      $region49: #{top_attention_forward.1} parent=5 // pred_check
        %p2086 = pneg %p2085
      $region50: #{top_attention_forward.1} parent=5 // pred_check_branch
        %2088 = sbr.rel (%p2086) target = $region52
      $region51: #{top_attention_forward.1} parent=5 // pred_region
        %s2089 = ssub.s32 %s15, 2
        // Predicated region
        $region53: #{top_attention_forward.1} parent=51 // pred_check
          %p2090 = pneg %p175
        $region54: #{top_attention_forward.1} parent=51 // pred_check_branch
          %2092 = sbr.rel (%p2090) target = $region56
        $region55: #{top_attention_forward.1} parent=51 // pred_region
          %s2093 = sand.u32 %s160, 1
          %s2094 = scalar_lea.sflag [#allocation5], %s2093
          %s2095 = sand.u32 %s160, 1
          %s2096 = scalar_lea.vmem [#allocation4], %s2095
          %2097 = dma.done %s2094, 16
        $region56: #{top_attention_forward.1} parent=51 // pred_fallthru
          _
      $region52: #{top_attention_forward.1} parent=5 // pred_fallthru
        _
    $region6: #{top_attention_forward.1} parent=1 // loop_footer
      %s19 = sadd.s32 1, %s15
    $region7: #{top_attention_forward.1} parent=1 // loop_footer_branch
      %14 = sbr.rel target = $region3
    $region8: #{top_attention_forward.1} parent=1 // loop_exit
      _
    %2098 = vsyncpa [#allocation5], 1
    %s2099 = scalar_lea.sflag [#allocation5], 1
    %2100 = vsyncpa %s2099, 1

</llo_original>
